<compile_context>
chip_gen: v5e
topology: v5e:2x2
jax: 0.10.0
libtpu: 0.0.40
codegen_flags: <defaults>
</compile_context>

<pallas_src>
import jax
import jax.numpy as jnp
from jax.experimental import pallas as pl
from jax.experimental.pallas import tpu as pltpu

# ----- small, self-consistent stand-in sizes (real: H=512, E=768, V=30522) -----
HIDDEN_SIZE = 32
EMBED_SIZE = 32
VOCAB_SIZE = 64
SRC_LEN = 8
DEC_LEN = 8
BATCH = 2


def _round_up(v, m):
    return ((v + m - 1) // m) * m


def _pad_dim(a, size, axis):
    if a.shape[axis] == size:
        return a
    widths = [(0, 0)] * a.ndim
    widths[axis] = (0, size - a.shape[axis])
    return jnp.pad(a, widths)


# ----------------------------- GRU recurrence kernel -----------------------------

def _gru_seq_kernel(gi_ref, h0_ref, whh_ref, bhh_ref, out_ref, h_scr):
    """Grid = (direction, time).  gi already holds x @ W_ih + b_ih for this step,
    so the serial loop only does the hidden-side projection h @ W_hh + b_hh."""
    H = h_scr.shape[-1]
    t = pl.program_id(1)

    @pl.when(t == 0)
    def _():
        h_scr[...] = h0_ref[0]

    h = h_scr[...]                                                    # (B, H)
    gi = gi_ref[0]                                                    # (B, 3H)
    gh = jnp.dot(h, whh_ref[0], preferred_element_type=jnp.float32) + bhh_ref[0]
    # PyTorch GRU gate order (r, z, n); at real sizes H is a multiple of 128 so
    # the gate slices are lane-aligned.
    r = jax.nn.sigmoid(gi[:, 0:H] + gh[:, 0:H])
    z = jax.nn.sigmoid(gi[:, H:2 * H] + gh[:, H:2 * H])
    n = jnp.tanh(gi[:, 2 * H:3 * H] + r * gh[:, 2 * H:3 * H])
    h_new = (1.0 - z) * n + z * h
    h_scr[...] = h_new
    out_ref[0] = h_new


def gru_recurrence(gi, h0, w_hh, b_hh):
    """Run D independent GRU scans of length T in one pallas_call.

    gi:   (D, T, B, 3H) time-major pre-projected inputs (x @ W_ih + b_ih).
    h0:   (D, B, H) initial hidden per direction.
    w_hh: (D, H, 3H);  b_hh: (D, 1, 3H).
    Direction 0 scans forward; direction 1 (if present) scans reversed
    (reads/writes position T-1-t) -> matches nn.GRU(bidirectional=True).
    Returns (D, T, B, H).
    """
    D, T, B, threeH = gi.shape
    H = threeH // 3
    gi_flat = gi.reshape(D * T, B, threeH)       # free reshape; single-int ref indexing
    # flat time index: d=0 -> t ; d=1 -> T + (T-1-t)
    s_idx = lambda d, t: d * T + t + d * (T - 1 - 2 * t)
    out = pl.pallas_call(
        _gru_seq_kernel,
        out_shape=jax.ShapeDtypeStruct((D * T, B, H), jnp.float32),
        grid_spec=pltpu.PrefetchScalarGridSpec(
            num_scalar_prefetch=0,
            grid=(D, T),
            in_specs=[
                pl.BlockSpec((1, B, threeH), lambda d, t: (s_idx(d, t), 0, 0)),
                pl.BlockSpec((1, B, H), lambda d, t: (d, 0, 0)),
                pl.BlockSpec((1, H, threeH), lambda d, t: (d, 0, 0)),
                pl.BlockSpec((1, 1, threeH), lambda d, t: (d, 0, 0)),
            ],
            out_specs=pl.BlockSpec((1, B, H), lambda d, t: (s_idx(d, t), 0, 0)),
            scratch_shapes=[pltpu.VMEM((B, H), jnp.float32)]),
        # direction axis is 'parallel' (v7x: one TensorCore per direction);
        # the serial time axis is 'arbitrary'.
        compiler_params=pltpu.CompilerParams(
            dimension_semantics=("parallel", "arbitrary")),
    )(gi_flat, h0, w_hh, b_hh)
    return out.reshape(D, T, B, H)


# ----------------------------- tiled linear kernels -----------------------------

def _linear_kernel(x_ref, w_ref, b_ref, o_ref):
    o_ref[...] = (jnp.dot(x_ref[...], w_ref[...], preferred_element_type=jnp.float32)
                  + b_ref[...])


def _linear2_kernel(x1_ref, w1_ref, x2_ref, w2_ref, b_ref, o_ref):
    # y = x1 @ w1 + x2 @ w2 + b  (Linear over a conceptual concat, without the concat)
    o_ref[...] = (jnp.dot(x1_ref[...], w1_ref[...], preferred_element_type=jnp.float32)
                  + jnp.dot(x2_ref[...], w2_ref[...], preferred_element_type=jnp.float32)
                  + b_ref[...])


def _tiled_matmul_call(kernel, xs, ws, b, *, tm, tn):
    """Shared tiled-linear launcher.

    grid = (N_tiles, M_tiles): each weight tile is DMA'd once and stays resident
    across the inner M sweep.  Inputs/outputs are zero-padded to tile multiples
    (cdiv grid, lane-dense unmasked stores) and the padding is sliced off after.
    TODO(synk): at real sizes store weights in bf16 (f32 accum) and set
                vmem_limit_bytes explicitly.
    """
    M = xs[0].shape[0]
    N = ws[0].shape[1]
    tm = min(tm, _round_up(M, 8))
    tn = min(tn, _round_up(N, 128))
    Mp, Np = _round_up(M, tm), _round_up(N, tn)
    xs = [_pad_dim(x, Mp, 0) for x in xs]
    ws = [_pad_dim(w, Np, 1) for w in ws]
    b = _pad_dim(b, Np, 1)

    in_specs, operands = [], []
    for x, w in zip(xs, ws):
        in_specs.append(pl.BlockSpec((tm, x.shape[1]), lambda j, i: (i, 0)))
        in_specs.append(pl.BlockSpec((w.shape[0], tn), lambda j, i: (0, j)))
        operands.extend([x, w])
    in_specs.append(pl.BlockSpec((1, tn), lambda j, i: (0, j)))
    operands.append(b)

    out = pl.pallas_call(
        kernel,
        out_shape=jax.ShapeDtypeStruct((Mp, Np), jnp.float32),
        grid_spec=pltpu.PrefetchScalarGridSpec(
            num_scalar_prefetch=0,
            grid=(Np // tn, Mp // tm),
            in_specs=in_specs,
            out_specs=pl.BlockSpec((tm, tn), lambda j, i: (i, j))),
        compiler_params=pltpu.CompilerParams(
            dimension_semantics=("parallel", "parallel")),
    )(*operands)
    return out[:M, :N]


def linear_tiled(x, w, b, *, tm=256, tn=1024):
    """y = x @ w + b."""
    return _tiled_matmul_call(_linear_kernel, [x], [w], b, tm=tm, tn=tn)


def linear2_tiled(x1, w1, x2, w2, b, *, tm=256, tn=1024):
    """y = x1 @ w1 + x2 @ w2 + b  (split-weight Linear; replaces concat+Linear)."""
    return _tiled_matmul_call(_linear2_kernel, [x1, x2], [w1, w2], b, tm=tm, tn=tn)


# ----------------------------- attention-context kernel -----------------------------

def _attn_ctx_kernel(encf_ref, encb_ref, vf_ref, vb_ref, mask_ref,
                     cwf_ref, cwb_ref, cb_ref, valid_ref, out_ref):
    """Additive attention of the reference module, evaluated once.

    The module's attention path is Linear -> Linear -> softmax with NO
    nonlinearity, so score_s = enc_s . v + (terms constant over source
    positions: decoder-hidden projection and biases).  Constant shifts cancel in
    the softmax, hence the attention weights and the projected context are
    independent of the decoder state and identical for every decoder step.
    """
    enc_f = encf_ref[...]                                   # (S, B, H) forward half
    enc_b = encb_ref[...]                                   # (S, B, H) backward half
    mask = mask_ref[...]                                    # (S, B), 1.0 = valid

    # lane-dense VPU/XLU score reduction (v = W_att_enc^T @ w_combine, folded outside)
    score = (jnp.sum(enc_f * vf_ref[...][None], axis=-1) +
             jnp.sum(enc_b * vb_ref[...][None], axis=-1))   # (S, B)
    neg = jnp.where(mask > 0.0, score, -1e30)
    m = jnp.max(neg, axis=0, keepdims=True)                 # (1, B)
    e = jnp.exp(neg - m) * mask
    denom = jnp.sum(e, axis=0, keepdims=True)               # (1, B)
    w = e * pl.reciprocal(jnp.maximum(denom, 1e-30), approx=True)      # masked softmax
    # weighted sum over S on the VPU/XLU (q=1 matmul would waste MXU rows)
    ctx_f = jnp.sum(w[:, :, None] * enc_f, axis=0)          # (B, H)
    ctx_b = jnp.sum(w[:, :, None] * enc_b, axis=0)          # (B, H)
    ctx = (jnp.dot(ctx_f, cwf_ref[...], preferred_element_type=jnp.float32) +
           jnp.dot(ctx_b, cwb_ref[...], preferred_element_type=jnp.float32) +
           cb_ref[...])                                      # context_projection
    out_ref[...] = ctx * valid_ref[...]                      # rows with empty mask -> 0


def attention_context(enc_f, enc_b, v_f, v_b, mask_t, ctx_w_f, ctx_w_b, ctx_b, valid):
    _, B, H = enc_f.shape
    return pl.pallas_call(
        _attn_ctx_kernel,
        out_shape=jax.ShapeDtypeStruct((B, H), jnp.float32),
    )(enc_f, enc_b, v_f, v_b, mask_t, ctx_w_f, ctx_w_b, ctx_b, valid)


# ----------------------------- parameters -----------------------------

def init_params(key):
    ks = jax.random.split(key, 24)

    def u(k, shape, scale=0.1):
        return jax.random.uniform(k, shape, jnp.float32, -scale, scale)

    E, H, V = EMBED_SIZE, HIDDEN_SIZE, VOCAB_SIZE
    return {
        # TODO(synk): frozen pretrained BERT is not reproducible in-script;
        #             stand-in deterministic embedding table producing the
        #             (B, S, embed_size) "bert_output" tensor.
        "bert_embed": u(ks[0], (V, E)),
        "dec_embed": u(ks[1], (V, E)),
        # encoder bidirectional GRU (fwd / bwd); weights stored transposed vs
        # torch: (in, 3H) / (H, 3H), gate order (r, z, n).
        "enc_f": {"w_ih": u(ks[2], (E, 3 * H)), "w_hh": u(ks[3], (H, 3 * H)),
                  "b_ih": u(ks[4], (1, 3 * H)), "b_hh": u(ks[5], (1, 3 * H))},
        "enc_b": {"w_ih": u(ks[6], (E, 3 * H)), "w_hh": u(ks[7], (H, 3 * H)),
                  "b_ih": u(ks[8], (1, 3 * H)), "b_hh": u(ks[9], (1, 3 * H))},
        # decoder GRU: input = [embedded | context]; W_ih pre-split so no lane concat.
        "dec": {"w_ih_emb": u(ks[10], (E, 3 * H)), "w_ih_ctx": u(ks[11], (H, 3 * H)),
                "w_hh": u(ks[12], (H, 3 * H)),
                "b_ih": u(ks[13], (1, 3 * H)), "b_hh": u(ks[14], (1, 3 * H))},
        "attn": {
            # attention Linear(3H -> H), input rows split as [enc_fwd | enc_bwd | hidden]
            "att_w_enc_f": u(ks[15], (H, H)),
            "att_w_enc_b": u(ks[16], (H, H)),
            "att_w_hid": u(ks[17], (H, H)),   # adds a per-row constant -> cancels in softmax
            "att_b": u(ks[18], (1, H)),       # cancels in softmax
            "comb_w": u(ks[19], (H, 1)),      # attention_combine weight (H -> 1)
            "comb_b": jnp.zeros((1, 1), jnp.float32),   # cancels in softmax
            # context_projection Linear(2H -> H) split by input rows [fwd | bwd]
            "ctx_w_f": u(ks[20], (H, H)), "ctx_w_b": u(ks[21], (H, H)),
            "ctx_b": u(ks[22], (1, H))},
        # output Linear(2H -> V) split by input rows: [decoder hidden | context]
        "out_w_h": u(ks[23], (H, V)),
        "out_w_c": u(jax.random.fold_in(key, 98), (H, V)),
        "out_b": jnp.zeros((1, V), jnp.float32),
    }


# ----------------------------- forward pass -----------------------------

def encoder_decoder_forward(params, input_ids, attention_mask, decoder_input_ids):
    """Mirrors EncoderDecoder.forward with teacher forcing (deterministic).
    Returns (B, dec_len - 1, vocab) logits."""
    B, S = input_ids.shape
    T = decoder_input_ids.shape[1]
    H, E, V = HIDDEN_SIZE, EMBED_SIZE, VOCAB_SIZE

    # Pad batch once at the boundary to a sublane-dense multiple of 8 (padded rows
    # get an all-zero attention mask -> zero context; outputs sliced off at the end).
    Bp = _round_up(B, 8)
    if Bp != B:
        pad = ((0, Bp - B), (0, 0))
        input_ids = jnp.pad(input_ids, pad)
        attention_mask = jnp.pad(attention_mask, pad)
        decoder_input_ids = jnp.pad(decoder_input_ids, pad)

    # ----- "BERT" (frozen) + eval-mode dropout (identity) -----
    # TODO(synk): nn.Dropout in training mode draws random masks; identity here.
    bert_t = params["bert_embed"][input_ids.T]                       # (S, Bp, E) time-major

    # ----- encoder: input-side projections hoisted into one big matmul per direction
    x_flat = bert_t.reshape(S * Bp, E)
    gi_f = linear_tiled(x_flat, params["enc_f"]["w_ih"], params["enc_f"]["b_ih"])
    gi_b = linear_tiled(x_flat, params["enc_b"]["w_ih"], params["enc_b"]["b_ih"])
    gi_enc = jnp.stack([gi_f.reshape(S, Bp, 3 * H), gi_b.reshape(S, Bp, 3 * H)])
    w_hh = jnp.stack([params["enc_f"]["w_hh"], params["enc_b"]["w_hh"]])
    b_hh = jnp.stack([params["enc_f"]["b_hh"], params["enc_b"]["b_hh"]])
    enc_out = gru_recurrence(gi_enc, jnp.zeros((2, Bp, H), jnp.float32),
                             w_hh, b_hh)                              # (2, S, Bp, H)
    # hidden = final fwd + final bwd  (== hidden.view(2, B, -1).sum(0))
    hidden0 = enc_out[0, S - 1] + enc_out[1, 0]                       # (Bp, H)

    # ----- attention context, hoisted out of the decoder loop (linear attention:
    #       softmax weights do not depend on the decoder hidden state) -----
    attn = params["attn"]
    v_f = (attn["att_w_enc_f"] @ attn["comb_w"]).T                    # (1, H)
    v_b = (attn["att_w_enc_b"] @ attn["comb_w"]).T                    # (1, H)
    mask_f = attention_mask.astype(jnp.float32)                       # (Bp, S)
    valid = (jnp.sum(mask_f, axis=1, keepdims=True) > 0.0).astype(jnp.float32)
    ctx = attention_context(enc_out[0], enc_out[1], v_f, v_b, mask_f.T,
                            attn["ctx_w_f"], attn["ctx_w_b"], attn["ctx_b"],
                            valid)                                    # (Bp, H)

    # ----- decoder: all input-side projections hoisted; only h @ W_hh in the loop
    # TODO(synk): torch.rand teacher-forcing coin flip is nondeterministic; fixed
    #             to always teacher-force (ratio = 1.0).
    dec_tok_t = decoder_input_ids.T[:T - 1]                           # (T-1, Bp)
    dec_emb = params["dec_embed"][dec_tok_t]                          # (T-1, Bp, E)
    ctx_rows_t = jnp.broadcast_to(ctx[None], (T - 1, Bp, H)).reshape((T - 1) * Bp, H)
    gi_dec = linear2_tiled(dec_emb.reshape((T - 1) * Bp, E), params["dec"]["w_ih_emb"],
                           ctx_rows_t, params["dec"]["w_ih_ctx"], params["dec"]["b_ih"])
    hid_seq = gru_recurrence(gi_dec.reshape(1, T - 1, Bp, 3 * H),
                             hidden0[None],
                             params["dec"]["w_hh"][None],
                             params["dec"]["b_hh"][None])[0]          # (T-1, Bp, H)

    # ----- vocab projection over all steps at once (split weights, no [h|ctx] concat)
    hid_bt = hid_seq.transpose(1, 0, 2).reshape(Bp * (T - 1), H)
    ctx_rows_b = jnp.broadcast_to(ctx[:, None], (Bp, T - 1, H)).reshape(Bp * (T - 1), H)
    logits = linear2_tiled(hid_bt, params["out_w_h"], ctx_rows_b, params["out_w_c"],
                           params["out_b"])                           # (Bp*(T-1), V)
    return logits.reshape(Bp, T - 1, V)[:B]


# ----------------------------- main -----------------------------

if __name__ == "__main__":
    key = jax.random.PRNGKey(0)
    k_param, k_src, k_dec = jax.random.split(key, 3)

    params = init_params(k_param)

    input_ids = jax.random.randint(k_src, (BATCH, SRC_LEN), 0, VOCAB_SIZE, dtype=jnp.int32)
    # prefix-valid attention masks (like BERT padding masks)
    attention_mask = jnp.array([[1] * SRC_LEN,
                                [1] * 5 + [0] * (SRC_LEN - 5)], dtype=jnp.int32)
    decoder_input_ids = jax.random.randint(k_dec, (BATCH, DEC_LEN), 0, VOCAB_SIZE, dtype=jnp.int32)

    fwd = jax.jit(encoder_decoder_forward)
    logits = jax.block_until_ready(fwd(params, input_ids, attention_mask, decoder_input_ids))

    assert logits.shape == (BATCH, DEC_LEN - 1, VOCAB_SIZE)
    assert bool(jnp.all(jnp.isfinite(logits)))
    print("KERNEL_OK")
</pallas_src>

<mosaic_0001>
module attributes {stable_mosaic.version = 11 : i64} {
  func.func @_linear_kernel(%arg0: i32, %arg1: i32, %arg2: memref<64x32xf32, #tpu.memory_space<vmem>>, %arg3: memref<32x128xf32, #tpu.memory_space<vmem>>, %arg4: memref<1x128xf32, #tpu.memory_space<vmem>>, %arg5: memref<64x128xf32, #tpu.memory_space<vmem>>) attributes {dimension_semantics = [#tpu.dimension_semantics<parallel>, #tpu.dimension_semantics<parallel>], iteration_bounds = array<i64: 1, 1>, scalar_prefetch = 0 : i64, scratch_operands = 0 : i64, tpu.core_type = #tpu.core_type<tc>, window_params = [{transform_indices = @transform_0, window_bounds = array<i64: 64, 32>}, {transform_indices = @transform_1, window_bounds = array<i64: 32, 128>}, {transform_indices = @transform_2, window_bounds = array<i64: 1, 128>}, {transform_indices = @transform_3, window_bounds = array<i64: 64, 128>}]} {
    %c0 = arith.constant 0 : index
    %c0_0 = arith.constant 0 : index
    %0 = vector.load %arg2[%c0, %c0_0] : memref<64x32xf32, #tpu.memory_space<vmem>>, vector<64x32xf32>
    %c0_1 = arith.constant 0 : index
    %c0_2 = arith.constant 0 : index
    %1 = vector.load %arg3[%c0_1, %c0_2] : memref<32x128xf32, #tpu.memory_space<vmem>>, vector<32x128xf32>
    %cst = arith.constant dense<0.000000e+00> : vector<64x128xf32>
    %2 = tpu.matmul %0, %1, %cst {dimension_numbers = #tpu.dot_dimension_numbers<[1], [0], [0], [1], [0, 0, 1, 1], [], []>} : vector<64x32xf32>, vector<32x128xf32>, vector<64x128xf32> -> vector<64x128xf32>
    %c0_3 = arith.constant 0 : index
    %c0_4 = arith.constant 0 : index
    %3 = vector.load %arg4[%c0_3, %c0_4] : memref<1x128xf32, #tpu.memory_space<vmem>>, vector<1x128xf32>
    %4 = vector.broadcast %3 : vector<1x128xf32> to vector<64x128xf32>
    %5 = arith.addf %2, %4 : vector<64x128xf32>
    %c0_5 = arith.constant 0 : index
    %c0_6 = arith.constant 0 : index
    %6 = vector.load %arg5[%c0_5, %c0_6] : memref<64x128xf32, #tpu.memory_space<vmem>>, vector<64x128xf32>
    tpu.vector_store %arg5[%c0_5, %c0_6], %5 {strides = array<i32>} : memref<64x128xf32, #tpu.memory_space<vmem>>, vector<64x128xf32>,
    return
  }
  func.func @transform_0(%arg0: i32, %arg1: i32) -> (i32, i32) {
    %c0_i32 = arith.constant 0 : i32
    %c0_i32_0 = arith.constant 0 : i32
    return %arg1, %c0_i32 : i32, i32
  }
  func.func @transform_1(%arg0: i32, %arg1: i32) -> (i32, i32) {
    %c0_i32 = arith.constant 0 : i32
    %c0_i32_0 = arith.constant 0 : i32
    return %c0_i32, %arg0 : i32, i32
  }
  func.func @transform_2(%arg0: i32, %arg1: i32) -> (i32, i32) {
    %c0_i32 = arith.constant 0 : i32
    %c0_i32_0 = arith.constant 0 : i32
    return %c0_i32, %arg0 : i32, i32
  }
  func.func @transform_3(%arg0: i32, %arg1: i32) -> (i32, i32) {
    %c0_i32 = arith.constant 0 : i32
    return %arg1, %arg0 : i32, i32
  }
}

module attributes {stable_mosaic.version = 11 : i64} {
  func.func @_gru_seq_kernel(%arg0: i32, %arg1: i32, %arg2: memref<1x8x96xf32, #tpu.memory_space<vmem>>, %arg3: memref<1x8x32xf32, #tpu.memory_space<vmem>>, %arg4: memref<1x32x96xf32, #tpu.memory_space<vmem>>, %arg5: memref<1x1x96xf32, #tpu.memory_space<vmem>>, %arg6: memref<1x8x32xf32, #tpu.memory_space<vmem>>, %arg7: memref<8x32xf32, #tpu.memory_space<vmem>>) attributes {dimension_semantics = [#tpu.dimension_semantics<parallel>, #tpu.dimension_semantics<arbitrary>], iteration_bounds = array<i64: 2, 8>, scalar_prefetch = 0 : i64, scratch_operands = 1 : i64, tpu.core_type = #tpu.core_type<tc>, window_params = [{transform_indices = @transform_0, window_bounds = array<i64: 1, 8, 96>}, {transform_indices = @transform_1, window_bounds = array<i64: 1, 8, 32>}, {transform_indices = @transform_2, window_bounds = array<i64: 1, 32, 96>}, {transform_indices = @transform_3, window_bounds = array<i64: 1, 1, 96>}, {transform_indices = @transform_4, window_bounds = array<i64: 1, 8, 32>}]} {
    %c0_i32 = arith.constant 0 : i32
    %0 = arith.cmpi eq, %arg1, %c0_i32 : i32
    %1 = arith.extui %0 : i1 to i32
    %c0_i32_0 = arith.constant 0 : i32
    %2 = arith.cmpi ne, %1, %c0_i32_0 : i32
    scf.if %2 {
      %c0_19 = arith.constant 0 : index
      %c0_20 = arith.constant 0 : index
      %c0_21 = arith.constant 0 : index
      %43 = vector.load %arg3[%c0_19, %c0_20, %c0_21] : memref<1x8x32xf32, #tpu.memory_space<vmem>>, vector<1x8x32xf32>
      %44 = vector.shape_cast %43 : vector<1x8x32xf32> to vector<8x32xf32>
      %c0_22 = arith.constant 0 : index
      %c0_23 = arith.constant 0 : index
      %45 = vector.load %arg7[%c0_22, %c0_23] : memref<8x32xf32, #tpu.memory_space<vmem>>, vector<8x32xf32>
      tpu.vector_store %arg7[%c0_22, %c0_23], %44 {strides = array<i32>} : memref<8x32xf32, #tpu.memory_space<vmem>>, vector<8x32xf32>,
    } else {
    }
    %c0 = arith.constant 0 : index
    %c0_1 = arith.constant 0 : index
    %3 = vector.load %arg7[%c0, %c0_1] : memref<8x32xf32, #tpu.memory_space<vmem>>, vector<8x32xf32>
    %c0_2 = arith.constant 0 : index
    %c0_3 = arith.constant 0 : index
    %c0_4 = arith.constant 0 : index
    %4 = vector.load %arg2[%c0_2, %c0_3, %c0_4] : memref<1x8x96xf32, #tpu.memory_space<vmem>>, vector<1x8x96xf32>
    %5 = vector.shape_cast %4 : vector<1x8x96xf32> to vector<8x96xf32>
    %c0_5 = arith.constant 0 : index
    %c0_6 = arith.constant 0 : index
    %c0_7 = arith.constant 0 : index
    %6 = vector.load %arg4[%c0_5, %c0_6, %c0_7] : memref<1x32x96xf32, #tpu.memory_space<vmem>>, vector<1x32x96xf32>
    %7 = vector.shape_cast %6 : vector<1x32x96xf32> to vector<32x96xf32>
    %cst = arith.constant dense<0.000000e+00> : vector<8x96xf32>
    %8 = tpu.matmul %3, %7, %cst {dimension_numbers = #tpu.dot_dimension_numbers<[1], [0], [0], [1], [0, 0, 1, 1], [], []>} : vector<8x32xf32>, vector<32x96xf32>, vector<8x96xf32> -> vector<8x96xf32>
    %c0_8 = arith.constant 0 : index
    %c0_9 = arith.constant 0 : index
    %c0_10 = arith.constant 0 : index
    %9 = vector.load %arg5[%c0_8, %c0_9, %c0_10] : memref<1x1x96xf32, #tpu.memory_space<vmem>>, vector<1x1x96xf32>
    %10 = vector.shape_cast %9 : vector<1x1x96xf32> to vector<1x96xf32>
    %11 = vector.broadcast %10 : vector<1x96xf32> to vector<8x96xf32>
    %12 = arith.addf %8, %11 : vector<8x96xf32>
    %13 = vector.extract_strided_slice %5 {offsets = [0, 0], sizes = [8, 32], strides = [1, 1]} : vector<8x96xf32> to vector<8x32xf32>
    %14 = vector.extract_strided_slice %12 {offsets = [0, 0], sizes = [8, 32], strides = [1, 1]} : vector<8x96xf32> to vector<8x32xf32>
    %15 = arith.addf %13, %14 : vector<8x32xf32>
    %16 = arith.negf %15 : vector<8x32xf32>
    %17 = math.exp %16 : vector<8x32xf32>
    %cst_11 = arith.constant 1.000000e+00 : f32
    %18 = vector.broadcast %cst_11 : f32 to vector<8x32xf32>
    %19 = arith.addf %18, %17 : vector<8x32xf32>
    %20 = arith.divf %18, %19 : vector<8x32xf32>
    %21 = vector.extract_strided_slice %5 {offsets = [0, 32], sizes = [8, 32], strides = [1, 1]} : vector<8x96xf32> to vector<8x32xf32>
    %22 = vector.extract_strided_slice %12 {offsets = [0, 32], sizes = [8, 32], strides = [1, 1]} : vector<8x96xf32> to vector<8x32xf32>
    %23 = arith.addf %21, %22 : vector<8x32xf32>
    %24 = arith.negf %23 : vector<8x32xf32>
    %25 = math.exp %24 : vector<8x32xf32>
    %cst_12 = arith.constant 1.000000e+00 : f32
    %26 = vector.broadcast %cst_12 : f32 to vector<8x32xf32>
    %27 = arith.addf %26, %25 : vector<8x32xf32>
    %28 = arith.divf %26, %27 : vector<8x32xf32>
    %29 = vector.extract_strided_slice %5 {offsets = [0, 64], sizes = [8, 32], strides = [1, 1]} : vector<8x96xf32> to vector<8x32xf32>
    %30 = vector.extract_strided_slice %12 {offsets = [0, 64], sizes = [8, 32], strides = [1, 1]} : vector<8x96xf32> to vector<8x32xf32>
    %31 = arith.mulf %20, %30 : vector<8x32xf32>
    %32 = arith.addf %29, %31 : vector<8x32xf32>
    %33 = math.tanh %32 : vector<8x32xf32>
    %cst_13 = arith.constant 1.000000e+00 : f32
    %34 = vector.broadcast %cst_13 : f32 to vector<8x32xf32>
    %35 = arith.subf %34, %28 : vector<8x32xf32>
    %36 = arith.mulf %35, %33 : vector<8x32xf32>
    %37 = arith.mulf %28, %3 : vector<8x32xf32>
    %38 = arith.addf %36, %37 : vector<8x32xf32>
    %c0_14 = arith.constant 0 : index
    %c0_15 = arith.constant 0 : index
    %39 = vector.load %arg7[%c0_14, %c0_15] : memref<8x32xf32, #tpu.memory_space<vmem>>, vector<8x32xf32>
    tpu.vector_store %arg7[%c0_14, %c0_15], %38 {strides = array<i32>} : memref<8x32xf32, #tpu.memory_space<vmem>>, vector<8x32xf32>,
    %c0_16 = arith.constant 0 : index
    %c0_17 = arith.constant 0 : index
    %c0_18 = arith.constant 0 : index
    %40 = vector.load %arg6[%c0_16, %c0_17, %c0_18] : memref<1x8x32xf32, #tpu.memory_space<vmem>>, vector<1x8x32xf32>
    %41 = vector.shape_cast %40 : vector<1x8x32xf32> to vector<8x32xf32>
    %42 = vector.shape_cast %38 : vector<8x32xf32> to vector<1x8x32xf32>
    tpu.vector_store %arg6[%c0_16, %c0_17, %c0_18], %42 {strides = array<i32>} : memref<1x8x32xf32, #tpu.memory_space<vmem>>, vector<1x8x32xf32>,
    return
  }
  func.func @transform_0(%arg0: i32, %arg1: i32) -> (i32, i32, i32) {
    %c8_i32 = arith.constant 8 : i32
    %0 = arith.muli %arg0, %c8_i32 : i32
    %1 = arith.addi %0, %arg1 : i32
    %c2_i32 = arith.constant 2 : i32
    %2 = arith.muli %c2_i32, %arg1 : i32
    %c7_i32 = arith.constant 7 : i32
    %3 = arith.subi %c7_i32, %2 : i32
    %4 = arith.muli %arg0, %3 : i32
    %5 = arith.addi %1, %4 : i32
    %c0_i32 = arith.constant 0 : i32
    %c0_i32_0 = arith.constant 0 : i32
    %c0_i32_1 = arith.constant 0 : i32
    return %5, %c0_i32, %c0_i32_0 : i32, i32, i32
  }
  func.func @transform_1(%arg0: i32, %arg1: i32) -> (i32, i32, i32) {
    %c0_i32 = arith.constant 0 : i32
    %c0_i32_0 = arith.constant 0 : i32
    %c0_i32_1 = arith.constant 0 : i32
    return %arg0, %c0_i32, %c0_i32_0 : i32, i32, i32
  }
  func.func @transform_2(%arg0: i32, %arg1: i32) -> (i32, i32, i32) {
    %c0_i32 = arith.constant 0 : i32
    %c0_i32_0 = arith.constant 0 : i32
    %c0_i32_1 = arith.constant 0 : i32
    return %arg0, %c0_i32, %c0_i32_0 : i32, i32, i32
  }
  func.func @transform_3(%arg0: i32, %arg1: i32) -> (i32, i32, i32) {
    %c0_i32 = arith.constant 0 : i32
    %c0_i32_0 = arith.constant 0 : i32
    %c0_i32_1 = arith.constant 0 : i32
    return %arg0, %c0_i32, %c0_i32_0 : i32, i32, i32
  }
  func.func @transform_4(%arg0: i32, %arg1: i32) -> (i32, i32, i32) {
    %c8_i32 = arith.constant 8 : i32
    %0 = arith.muli %arg0, %c8_i32 : i32
    %1 = arith.addi %0, %arg1 : i32
    %c2_i32 = arith.constant 2 : i32
    %2 = arith.muli %c2_i32, %arg1 : i32
    %c7_i32 = arith.constant 7 : i32
    %3 = arith.subi %c7_i32, %2 : i32
    %4 = arith.muli %arg0, %3 : i32
    %5 = arith.addi %1, %4 : i32
    %c0_i32 = arith.constant 0 : i32
    %c0_i32_0 = arith.constant 0 : i32
    %c0_i32_1 = arith.constant 0 : i32
    return %5, %c0_i32, %c0_i32_0 : i32, i32, i32
  }
}

module attributes {stable_mosaic.version = 11 : i64} {
  func.func @_attn_ctx_kernel(%arg0: memref<8x8x32xf32, #tpu.memory_space<vmem>>, %arg1: memref<8x8x32xf32, #tpu.memory_space<vmem>>, %arg2: memref<1x32xf32, #tpu.memory_space<vmem>>, %arg3: memref<1x32xf32, #tpu.memory_space<vmem>>, %arg4: memref<8x8xf32, #tpu.memory_space<vmem>>, %arg5: memref<32x32xf32, #tpu.memory_space<vmem>>, %arg6: memref<32x32xf32, #tpu.memory_space<vmem>>, %arg7: memref<1x32xf32, #tpu.memory_space<vmem>>, %arg8: memref<8x1xf32, #tpu.memory_space<vmem>>, %arg9: memref<8x32xf32, #tpu.memory_space<vmem>>) attributes {dimension_semantics = [], scalar_prefetch = 0 : i64, scratch_operands = 0 : i64, tpu.core_type = #tpu.core_type<tc>} {
    %c0 = arith.constant 0 : index
    %c0_0 = arith.constant 0 : index
    %c0_1 = arith.constant 0 : index
    %0 = vector.load %arg0[%c0, %c0_0, %c0_1] : memref<8x8x32xf32, #tpu.memory_space<vmem>>, vector<8x8x32xf32>
    %c0_2 = arith.constant 0 : index
    %c0_3 = arith.constant 0 : index
    %c0_4 = arith.constant 0 : index
    %1 = vector.load %arg1[%c0_2, %c0_3, %c0_4] : memref<8x8x32xf32, #tpu.memory_space<vmem>>, vector<8x8x32xf32>
    %c0_5 = arith.constant 0 : index
    %c0_6 = arith.constant 0 : index
    %2 = vector.load %arg4[%c0_5, %c0_6] : memref<8x8xf32, #tpu.memory_space<vmem>>, vector<8x8xf32>
    %c0_7 = arith.constant 0 : index
    %c0_8 = arith.constant 0 : index
    %3 = vector.load %arg2[%c0_7, %c0_8] : memref<1x32xf32, #tpu.memory_space<vmem>>, vector<1x32xf32>
    %4 = vector.shape_cast %3 : vector<1x32xf32> to vector<1x1x32xf32>
    %5 = vector.broadcast %4 : vector<1x1x32xf32> to vector<8x8x32xf32>
    %6 = arith.mulf %0, %5 : vector<8x8x32xf32>
    %cst = arith.constant dense<0.000000e+00> : vector<8x8xf32>
    %7 = vector.multi_reduction <add>, %6, %cst [2] : vector<8x8x32xf32> to vector<8x8xf32>
    %c0_9 = arith.constant 0 : index
    %c0_10 = arith.constant 0 : index
    %8 = vector.load %arg3[%c0_9, %c0_10] : memref<1x32xf32, #tpu.memory_space<vmem>>, vector<1x32xf32>
    %9 = vector.shape_cast %8 : vector<1x32xf32> to vector<1x1x32xf32>
    %10 = vector.broadcast %9 : vector<1x1x32xf32> to vector<8x8x32xf32>
    %11 = arith.mulf %1, %10 : vector<8x8x32xf32>
    %cst_11 = arith.constant dense<0.000000e+00> : vector<8x8xf32>
    %12 = vector.multi_reduction <add>, %11, %cst_11 [2] : vector<8x8x32xf32> to vector<8x8xf32>
    %13 = arith.addf %7, %12 : vector<8x8xf32>
    %cst_12 = arith.constant 0.000000e+00 : f32
    %14 = vector.broadcast %cst_12 : f32 to vector<8x8xf32>
    %15 = arith.cmpf ogt, %2, %14 : vector<8x8xf32>
    %cst_13 = arith.constant -1.000000e+30 : f32
    %16 = vector.broadcast %cst_13 : f32 to vector<8x8xf32>
    %17 = arith.select %15, %13, %16 : vector<8x8xi1>, vector<8x8xf32>
    %cst_14 = arith.constant dense<0xFF800000> : vector<8xf32>
    %18 = vector.multi_reduction <maximumf>, %17, %cst_14 [0] : vector<8x8xf32> to vector<8xf32>
    %19 = vector.shape_cast %18 : vector<8xf32> to vector<1x8xf32>
    %20 = vector.broadcast %19 : vector<1x8xf32> to vector<8x8xf32>
    %21 = arith.subf %17, %20 : vector<8x8xf32>
    %22 = math.exp %21 : vector<8x8xf32>
    %23 = arith.mulf %22, %2 : vector<8x8xf32>
    %cst_15 = arith.constant dense<0.000000e+00> : vector<8xf32>
    %24 = vector.multi_reduction <add>, %23, %cst_15 [0] : vector<8x8xf32> to vector<8xf32>
    %25 = vector.shape_cast %24 : vector<8xf32> to vector<1x8xf32>
    %cst_16 = arith.constant 1.000000e-30 : f32
    %26 = vector.broadcast %cst_16 : f32 to vector<1x8xf32>
    %27 = arith.maximumf %25, %26 : vector<1x8xf32>
    %28 = tpu.reciprocal %27 {approx = true} : vector<1x8xf32> -> vector<1x8xf32>
    %29 = vector.broadcast %28 : vector<1x8xf32> to vector<8x8xf32>
    %30 = arith.mulf %23, %29 : vector<8x8xf32>
    %31 = vector.shape_cast %30 : vector<8x8xf32> to vector<8x8x1xf32>
    %32 = vector.broadcast %31 : vector<8x8x1xf32> to vector<8x8x32xf32>
    %33 = arith.mulf %32, %0 : vector<8x8x32xf32>
    %cst_17 = arith.constant dense<0.000000e+00> : vector<8x32xf32>
    %34 = vector.multi_reduction <add>, %33, %cst_17 [0] : vector<8x8x32xf32> to vector<8x32xf32>
    %35 = vector.shape_cast %30 : vector<8x8xf32> to vector<8x8x1xf32>
    %36 = vector.broadcast %35 : vector<8x8x1xf32> to vector<8x8x32xf32>
    %37 = arith.mulf %36, %1 : vector<8x8x32xf32>
    %cst_18 = arith.constant dense<0.000000e+00> : vector<8x32xf32>
    %38 = vector.multi_reduction <add>, %37, %cst_18 [0] : vector<8x8x32xf32> to vector<8x32xf32>
    %c0_19 = arith.constant 0 : index
    %c0_20 = arith.constant 0 : index
    %39 = vector.load %arg5[%c0_19, %c0_20] : memref<32x32xf32, #tpu.memory_space<vmem>>, vector<32x32xf32>
    %cst_21 = arith.constant dense<0.000000e+00> : vector<8x32xf32>
    %40 = tpu.matmul %34, %39, %cst_21 {dimension_numbers = #tpu.dot_dimension_numbers<[1], [0], [0], [1], [0, 0, 1, 1], [], []>} : vector<8x32xf32>, vector<32x32xf32>, vector<8x32xf32> -> vector<8x32xf32>
    %c0_22 = arith.constant 0 : index
    %c0_23 = arith.constant 0 : index
    %41 = vector.load %arg6[%c0_22, %c0_23] : memref<32x32xf32, #tpu.memory_space<vmem>>, vector<32x32xf32>
    %cst_24 = arith.constant dense<0.000000e+00> : vector<8x32xf32>
    %42 = tpu.matmul %38, %41, %cst_24 {dimension_numbers = #tpu.dot_dimension_numbers<[1], [0], [0], [1], [0, 0, 1, 1], [], []>} : vector<8x32xf32>, vector<32x32xf32>, vector<8x32xf32> -> vector<8x32xf32>
    %43 = arith.addf %40, %42 : vector<8x32xf32>
    %c0_25 = arith.constant 0 : index
    %c0_26 = arith.constant 0 : index
    %44 = vector.load %arg7[%c0_25, %c0_26] : memref<1x32xf32, #tpu.memory_space<vmem>>, vector<1x32xf32>
    %45 = vector.broadcast %44 : vector<1x32xf32> to vector<8x32xf32>
    %46 = arith.addf %43, %45 : vector<8x32xf32>
    %c0_27 = arith.constant 0 : index
    %c0_28 = arith.constant 0 : index
    %47 = vector.load %arg8[%c0_27, %c0_28] : memref<8x1xf32, #tpu.memory_space<vmem>>, vector<8x1xf32>
    %48 = vector.broadcast %47 : vector<8x1xf32> to vector<8x32xf32>
    %49 = arith.mulf %46, %48 : vector<8x32xf32>
    %c0_29 = arith.constant 0 : index
    %c0_30 = arith.constant 0 : index
    %50 = vector.load %arg9[%c0_29, %c0_30] : memref<8x32xf32, #tpu.memory_space<vmem>>, vector<8x32xf32>
    tpu.vector_store %arg9[%c0_29, %c0_30], %49 {strides = array<i32>} : memref<8x32xf32, #tpu.memory_space<vmem>>, vector<8x32xf32>,
    return
  }
}

module attributes {stable_mosaic.version = 11 : i64} {
  func.func @_linear2_kernel(%arg0: i32, %arg1: i32, %arg2: memref<56x32xf32, #tpu.memory_space<vmem>>, %arg3: memref<32x128xf32, #tpu.memory_space<vmem>>, %arg4: memref<56x32xf32, #tpu.memory_space<vmem>>, %arg5: memref<32x128xf32, #tpu.memory_space<vmem>>, %arg6: memref<1x128xf32, #tpu.memory_space<vmem>>, %arg7: memref<56x128xf32, #tpu.memory_space<vmem>>) attributes {dimension_semantics = [#tpu.dimension_semantics<parallel>, #tpu.dimension_semantics<parallel>], iteration_bounds = array<i64: 1, 1>, scalar_prefetch = 0 : i64, scratch_operands = 0 : i64, tpu.core_type = #tpu.core_type<tc>, window_params = [{transform_indices = @transform_0, window_bounds = array<i64: 56, 32>}, {transform_indices = @transform_1, window_bounds = array<i64: 32, 128>}, {transform_indices = @transform_2, window_bounds = array<i64: 56, 32>}, {transform_indices = @transform_3, window_bounds = array<i64: 32, 128>}, {transform_indices = @transform_4, window_bounds = array<i64: 1, 128>}, {transform_indices = @transform_5, window_bounds = array<i64: 56, 128>}]} {
    %c0 = arith.constant 0 : index
    %c0_0 = arith.constant 0 : index
    %0 = vector.load %arg2[%c0, %c0_0] : memref<56x32xf32, #tpu.memory_space<vmem>>, vector<56x32xf32>
    %c0_1 = arith.constant 0 : index
    %c0_2 = arith.constant 0 : index
    %1 = vector.load %arg3[%c0_1, %c0_2] : memref<32x128xf32, #tpu.memory_space<vmem>>, vector<32x128xf32>
    %cst = arith.constant dense<0.000000e+00> : vector<56x128xf32>
    %2 = tpu.matmul %0, %1, %cst {dimension_numbers = #tpu.dot_dimension_numbers<[1], [0], [0], [1], [0, 0, 1, 1], [], []>} : vector<56x32xf32>, vector<32x128xf32>, vector<56x128xf32> -> vector<56x128xf32>
    %c0_3 = arith.constant 0 : index
    %c0_4 = arith.constant 0 : index
    %3 = vector.load %arg4[%c0_3, %c0_4] : memref<56x32xf32, #tpu.memory_space<vmem>>, vector<56x32xf32>
    %c0_5 = arith.constant 0 : index
    %c0_6 = arith.constant 0 : index
    %4 = vector.load %arg5[%c0_5, %c0_6] : memref<32x128xf32, #tpu.memory_space<vmem>>, vector<32x128xf32>
    %cst_7 = arith.constant dense<0.000000e+00> : vector<56x128xf32>
    %5 = tpu.matmul %3, %4, %cst_7 {dimension_numbers = #tpu.dot_dimension_numbers<[1], [0], [0], [1], [0, 0, 1, 1], [], []>} : vector<56x32xf32>, vector<32x128xf32>, vector<56x128xf32> -> vector<56x128xf32>
    %6 = arith.addf %2, %5 : vector<56x128xf32>
    %c0_8 = arith.constant 0 : index
    %c0_9 = arith.constant 0 : index
    %7 = vector.load %arg6[%c0_8, %c0_9] : memref<1x128xf32, #tpu.memory_space<vmem>>, vector<1x128xf32>
    %8 = vector.broadcast %7 : vector<1x128xf32> to vector<56x128xf32>
    %9 = arith.addf %6, %8 : vector<56x128xf32>
    %c0_10 = arith.constant 0 : index
    %c0_11 = arith.constant 0 : index
    %10 = vector.load %arg7[%c0_10, %c0_11] : memref<56x128xf32, #tpu.memory_space<vmem>>, vector<56x128xf32>
    tpu.vector_store %arg7[%c0_10, %c0_11], %9 {strides = array<i32>} : memref<56x128xf32, #tpu.memory_space<vmem>>, vector<56x128xf32>,
    return
  }
  func.func @transform_0(%arg0: i32, %arg1: i32) -> (i32, i32) {
    %c0_i32 = arith.constant 0 : i32
    %c0_i32_0 = arith.constant 0 : i32
    return %arg1, %c0_i32 : i32, i32
  }
  func.func @transform_1(%arg0: i32, %arg1: i32) -> (i32, i32) {
    %c0_i32 = arith.constant 0 : i32
    %c0_i32_0 = arith.constant 0 : i32
    return %c0_i32, %arg0 : i32, i32
  }
  func.func @transform_2(%arg0: i32, %arg1: i32) -> (i32, i32) {
    %c0_i32 = arith.constant 0 : i32
    %c0_i32_0 = arith.constant 0 : i32
    return %arg1, %c0_i32 : i32, i32
  }
  func.func @transform_3(%arg0: i32, %arg1: i32) -> (i32, i32) {
    %c0_i32 = arith.constant 0 : i32
    %c0_i32_0 = arith.constant 0 : i32
    return %c0_i32, %arg0 : i32, i32
  }
  func.func @transform_4(%arg0: i32, %arg1: i32) -> (i32, i32) {
    %c0_i32 = arith.constant 0 : i32
    %c0_i32_0 = arith.constant 0 : i32
    return %c0_i32, %arg0 : i32, i32
  }
  func.func @transform_5(%arg0: i32, %arg1: i32) -> (i32, i32) {
    %c0_i32 = arith.constant 0 : i32
    return %arg1, %arg0 : i32, i32
  }
}

module attributes {stable_mosaic.version = 11 : i64} {
  func.func @_gru_seq_kernel(%arg0: i32, %arg1: i32, %arg2: memref<1x8x96xf32, #tpu.memory_space<vmem>>, %arg3: memref<1x8x32xf32, #tpu.memory_space<vmem>>, %arg4: memref<1x32x96xf32, #tpu.memory_space<vmem>>, %arg5: memref<1x1x96xf32, #tpu.memory_space<vmem>>, %arg6: memref<1x8x32xf32, #tpu.memory_space<vmem>>, %arg7: memref<8x32xf32, #tpu.memory_space<vmem>>) attributes {dimension_semantics = [#tpu.dimension_semantics<parallel>, #tpu.dimension_semantics<arbitrary>], iteration_bounds = array<i64: 1, 7>, scalar_prefetch = 0 : i64, scratch_operands = 1 : i64, tpu.core_type = #tpu.core_type<tc>, window_params = [{transform_indices = @transform_0, window_bounds = array<i64: 1, 8, 96>}, {transform_indices = @transform_1, window_bounds = array<i64: 1, 8, 32>}, {transform_indices = @transform_2, window_bounds = array<i64: 1, 32, 96>}, {transform_indices = @transform_3, window_bounds = array<i64: 1, 1, 96>}, {transform_indices = @transform_4, window_bounds = array<i64: 1, 8, 32>}]} {
    %c0_i32 = arith.constant 0 : i32
    %0 = arith.cmpi eq, %arg1, %c0_i32 : i32
    %1 = arith.extui %0 : i1 to i32
    %c0_i32_0 = arith.constant 0 : i32
    %2 = arith.cmpi ne, %1, %c0_i32_0 : i32
    scf.if %2 {
      %c0_19 = arith.constant 0 : index
      %c0_20 = arith.constant 0 : index
      %c0_21 = arith.constant 0 : index
      %43 = vector.load %arg3[%c0_19, %c0_20, %c0_21] : memref<1x8x32xf32, #tpu.memory_space<vmem>>, vector<1x8x32xf32>
      %44 = vector.shape_cast %43 : vector<1x8x32xf32> to vector<8x32xf32>
      %c0_22 = arith.constant 0 : index
      %c0_23 = arith.constant 0 : index
      %45 = vector.load %arg7[%c0_22, %c0_23] : memref<8x32xf32, #tpu.memory_space<vmem>>, vector<8x32xf32>
      tpu.vector_store %arg7[%c0_22, %c0_23], %44 {strides = array<i32>} : memref<8x32xf32, #tpu.memory_space<vmem>>, vector<8x32xf32>,
    } else {
    }
    %c0 = arith.constant 0 : index
    %c0_1 = arith.constant 0 : index
    %3 = vector.load %arg7[%c0, %c0_1] : memref<8x32xf32, #tpu.memory_space<vmem>>, vector<8x32xf32>
    %c0_2 = arith.constant 0 : index
    %c0_3 = arith.constant 0 : index
    %c0_4 = arith.constant 0 : index
    %4 = vector.load %arg2[%c0_2, %c0_3, %c0_4] : memref<1x8x96xf32, #tpu.memory_space<vmem>>, vector<1x8x96xf32>
    %5 = vector.shape_cast %4 : vector<1x8x96xf32> to vector<8x96xf32>
    %c0_5 = arith.constant 0 : index
    %c0_6 = arith.constant 0 : index
    %c0_7 = arith.constant 0 : index
    %6 = vector.load %arg4[%c0_5, %c0_6, %c0_7] : memref<1x32x96xf32, #tpu.memory_space<vmem>>, vector<1x32x96xf32>
    %7 = vector.shape_cast %6 : vector<1x32x96xf32> to vector<32x96xf32>
    %cst = arith.constant dense<0.000000e+00> : vector<8x96xf32>
    %8 = tpu.matmul %3, %7, %cst {dimension_numbers = #tpu.dot_dimension_numbers<[1], [0], [0], [1], [0, 0, 1, 1], [], []>} : vector<8x32xf32>, vector<32x96xf32>, vector<8x96xf32> -> vector<8x96xf32>
    %c0_8 = arith.constant 0 : index
    %c0_9 = arith.constant 0 : index
    %c0_10 = arith.constant 0 : index
    %9 = vector.load %arg5[%c0_8, %c0_9, %c0_10] : memref<1x1x96xf32, #tpu.memory_space<vmem>>, vector<1x1x96xf32>
    %10 = vector.shape_cast %9 : vector<1x1x96xf32> to vector<1x96xf32>
    %11 = vector.broadcast %10 : vector<1x96xf32> to vector<8x96xf32>
    %12 = arith.addf %8, %11 : vector<8x96xf32>
    %13 = vector.extract_strided_slice %5 {offsets = [0, 0], sizes = [8, 32], strides = [1, 1]} : vector<8x96xf32> to vector<8x32xf32>
    %14 = vector.extract_strided_slice %12 {offsets = [0, 0], sizes = [8, 32], strides = [1, 1]} : vector<8x96xf32> to vector<8x32xf32>
    %15 = arith.addf %13, %14 : vector<8x32xf32>
    %16 = arith.negf %15 : vector<8x32xf32>
    %17 = math.exp %16 : vector<8x32xf32>
    %cst_11 = arith.constant 1.000000e+00 : f32
    %18 = vector.broadcast %cst_11 : f32 to vector<8x32xf32>
    %19 = arith.addf %18, %17 : vector<8x32xf32>
    %20 = arith.divf %18, %19 : vector<8x32xf32>
    %21 = vector.extract_strided_slice %5 {offsets = [0, 32], sizes = [8, 32], strides = [1, 1]} : vector<8x96xf32> to vector<8x32xf32>
    %22 = vector.extract_strided_slice %12 {offsets = [0, 32], sizes = [8, 32], strides = [1, 1]} : vector<8x96xf32> to vector<8x32xf32>
    %23 = arith.addf %21, %22 : vector<8x32xf32>
    %24 = arith.negf %23 : vector<8x32xf32>
    %25 = math.exp %24 : vector<8x32xf32>
    %cst_12 = arith.constant 1.000000e+00 : f32
    %26 = vector.broadcast %cst_12 : f32 to vector<8x32xf32>
    %27 = arith.addf %26, %25 : vector<8x32xf32>
    %28 = arith.divf %26, %27 : vector<8x32xf32>
    %29 = vector.extract_strided_slice %5 {offsets = [0, 64], sizes = [8, 32], strides = [1, 1]} : vector<8x96xf32> to vector<8x32xf32>
    %30 = vector.extract_strided_slice %12 {offsets = [0, 64], sizes = [8, 32], strides = [1, 1]} : vector<8x96xf32> to vector<8x32xf32>
    %31 = arith.mulf %20, %30 : vector<8x32xf32>
    %32 = arith.addf %29, %31 : vector<8x32xf32>
    %33 = math.tanh %32 : vector<8x32xf32>
    %cst_13 = arith.constant 1.000000e+00 : f32
    %34 = vector.broadcast %cst_13 : f32 to vector<8x32xf32>
    %35 = arith.subf %34, %28 : vector<8x32xf32>
    %36 = arith.mulf %35, %33 : vector<8x32xf32>
    %37 = arith.mulf %28, %3 : vector<8x32xf32>
    %38 = arith.addf %36, %37 : vector<8x32xf32>
    %c0_14 = arith.constant 0 : index
    %c0_15 = arith.constant 0 : index
    %39 = vector.load %arg7[%c0_14, %c0_15] : memref<8x32xf32, #tpu.memory_space<vmem>>, vector<8x32xf32>
    tpu.vector_store %arg7[%c0_14, %c0_15], %38 {strides = array<i32>} : memref<8x32xf32, #tpu.memory_space<vmem>>, vector<8x32xf32>,
    %c0_16 = arith.constant 0 : index
    %c0_17 = arith.constant 0 : index
    %c0_18 = arith.constant 0 : index
    %40 = vector.load %arg6[%c0_16, %c0_17, %c0_18] : memref<1x8x32xf32, #tpu.memory_space<vmem>>, vector<1x8x32xf32>
    %41 = vector.shape_cast %40 : vector<1x8x32xf32> to vector<8x32xf32>
    %42 = vector.shape_cast %38 : vector<8x32xf32> to vector<1x8x32xf32>
    tpu.vector_store %arg6[%c0_16, %c0_17, %c0_18], %42 {strides = array<i32>} : memref<1x8x32xf32, #tpu.memory_space<vmem>>, vector<1x8x32xf32>,
    return
  }
  func.func @transform_0(%arg0: i32, %arg1: i32) -> (i32, i32, i32) {
    %c7_i32 = arith.constant 7 : i32
    %0 = arith.muli %arg0, %c7_i32 : i32
    %1 = arith.addi %0, %arg1 : i32
    %c2_i32 = arith.constant 2 : i32
    %2 = arith.muli %c2_i32, %arg1 : i32
    %c6_i32 = arith.constant 6 : i32
    %3 = arith.subi %c6_i32, %2 : i32
    %4 = arith.muli %arg0, %3 : i32
    %5 = arith.addi %1, %4 : i32
    %c0_i32 = arith.constant 0 : i32
    %c0_i32_0 = arith.constant 0 : i32
    %c0_i32_1 = arith.constant 0 : i32
    return %5, %c0_i32, %c0_i32_0 : i32, i32, i32
  }
  func.func @transform_1(%arg0: i32, %arg1: i32) -> (i32, i32, i32) {
    %c0_i32 = arith.constant 0 : i32
    %c0_i32_0 = arith.constant 0 : i32
    %c0_i32_1 = arith.constant 0 : i32
    return %arg0, %c0_i32, %c0_i32_0 : i32, i32, i32
  }
  func.func @transform_2(%arg0: i32, %arg1: i32) -> (i32, i32, i32) {
    %c0_i32 = arith.constant 0 : i32
    %c0_i32_0 = arith.constant 0 : i32
    %c0_i32_1 = arith.constant 0 : i32
    return %arg0, %c0_i32, %c0_i32_0 : i32, i32, i32
  }
  func.func @transform_3(%arg0: i32, %arg1: i32) -> (i32, i32, i32) {
    %c0_i32 = arith.constant 0 : i32
    %c0_i32_0 = arith.constant 0 : i32
    %c0_i32_1 = arith.constant 0 : i32
    return %arg0, %c0_i32, %c0_i32_0 : i32, i32, i32
  }
  func.func @transform_4(%arg0: i32, %arg1: i32) -> (i32, i32, i32) {
    %c7_i32 = arith.constant 7 : i32
    %0 = arith.muli %arg0, %c7_i32 : i32
    %1 = arith.addi %0, %arg1 : i32
    %c2_i32 = arith.constant 2 : i32
    %2 = arith.muli %c2_i32, %arg1 : i32
    %c6_i32 = arith.constant 6 : i32
    %3 = arith.subi %c6_i32, %2 : i32
    %4 = arith.muli %arg0, %3 : i32
    %5 = arith.addi %1, %4 : i32
    %c0_i32 = arith.constant 0 : i32
    %c0_i32_0 = arith.constant 0 : i32
    %c0_i32_1 = arith.constant 0 : i32
    return %5, %c0_i32, %c0_i32_0 : i32, i32, i32
  }
}

</mosaic_0001>

<llo_original>
// kernel: encoder_decoder_forward.8
$region0: #{encoder_decoder_forward.8}
  #allocation0 [shape = 'u32[]', space=smem, size = 0x4, offset = 0x4, fixed_abs, tag = 'smem constant byte address 0x4 - core index']
  #allocation1 [shape = 'u32[72,128]{1,0:T(1,128)}', space=vmem, size = 0x9000, scoped, tag = 'internal scratch']
  %s0 = inlined_call_operand.vmem [shape: f32[64,32], index: 0, kind: input, shape index: {}]
  %s1 = inlined_call_operand.vmem [shape: f32[32,128], index: 1, kind: input, shape index: {}]
  %s2 = inlined_call_operand.vmem [shape: f32[1,128], index: 2, kind: input, shape index: {}]
  %s3 = inlined_call_operand.vmem [shape: f32[64,128], index: 3, kind: output, shape index: {}]
  %s4 = sld [smem:[#allocation0]]
  $region22: #{encoder_decoder_forward.8} parent=0
    _
  %s6 = ssub.s32 1, %s4
  %s7 = scalar_select 0, %s6, %s4
  // Predicated region
  $region2: #{encoder_decoder_forward.8} parent=0 // pred_check
    _
  $region3: #{encoder_decoder_forward.8} parent=0 // pred_check_branch
    %9 = sbr.rel (0) target = $region5
  $region4: #{encoder_decoder_forward.8} parent=0 // pred_region
    _
  $region5: #{encoder_decoder_forward.8} parent=0 // pred_fallthru
    _
  // Predicated region
  $region6: #{encoder_decoder_forward.8} parent=0 // pred_check
    _
  $region7: #{encoder_decoder_forward.8} parent=0 // pred_check_branch
    %11 = sbr.rel (0) target = $region9
  $region8: #{encoder_decoder_forward.8} parent=0 // pred_region
    _
  $region9: #{encoder_decoder_forward.8} parent=0 // pred_fallthru
    _
  // Predicated region
  $region10: #{encoder_decoder_forward.8} parent=0 // pred_check
    _
  $region11: #{encoder_decoder_forward.8} parent=0 // pred_check_branch
    %13 = sbr.rel (0) target = $region13
  $region12: #{encoder_decoder_forward.8} parent=0 // pred_region
    _
  $region13: #{encoder_decoder_forward.8} parent=0 // pred_fallthru
    _
  %v14 = vld [vmem:[%s0] sm:$0xff]
  %v15 = vld [vmem:[%s0 + $0x8] sm:$0xff]
  %v16 = vld [vmem:[%s0 + $0x10] sm:$0xff]
  %v17 = vld [vmem:[%s0 + $0x18] sm:$0xff]
  %v18 = vld [vmem:[%s0 + $0x20] sm:$0xff]
  %v19 = vld [vmem:[%s0 + $0x28] sm:$0xff]
  %v20 = vld [vmem:[%s0 + $0x30] sm:$0xff]
  %v21 = vld [vmem:[%s0 + $0x38] sm:$0xff]
  %v22 = vld [vmem:[%s1] sm:$0xff]
  %v23 = vld [vmem:[%s1 + $0x8] sm:$0xff]
  %v24 = vld [vmem:[%s1 + $0x10] sm:$0xff]
  %v25 = vld [vmem:[%s1 + $0x18] sm:$0xff]
  %v26 = vld [vmem:[%s2] sm:$0x1]
  %v28 = vperm.slane %v26, 0
  %vm30 = vcmask 261120
  %v32 = vsel %vm30, %v14, 0
  %v35 = vsel %vm30, %v15, 0
  %v38 = vsel %vm30, %v16, 0
  %v41 = vsel %vm30, %v17, 0
  %v44 = vsel %vm30, %v18, 0
  %v47 = vsel %vm30, %v19, 0
  %v50 = vsel %vm30, %v20, 0
  %v53 = vsel %vm30, %v21, 0
  %55 = vmatpush.msra.mxu0 0.0
  %56 = vmatpush.msra.mxu0 0.0
  %57 = vmatpush.msra.mxu0 0.0
  %58 = vmatpush.msra.mxu0 0.0
  %59 = vmatpush.msra.mxu0 0.0
  %60 = vmatpush.msra.mxu0 0.0
  %61 = vmatpush.msra.mxu0 0.0
  %62 = vmatpush.msra.mxu0 0.0
  %63 = vmatpush.msra.mxu0 0.0
  %64 = vmatpush.msra.mxu0 0.0
  %65 = vmatpush.msra.mxu0 0.0
  %66 = vmatpush.msra.mxu0 0.0
  %67 = vmatpush.msra.mxu0 %v25
  %68 = vmatpush.msra.mxu0 %v24
  %69 = vmatpush.msra.mxu0 %v23
  %70 = vmatpush.msra.mxu0 %v22
  %71 = vmatmul.f32.gmra.mxu0 %v32
  %v72 = vpop.f32.mrf.mxu0
  %v73 = vadd.f32 %v28, %v72
  %74 = vmatmul.f32.gmra.mxu0 %v35
  %v75 = vpop.f32.mrf.mxu0
  %v76 = vadd.f32 %v28, %v75
  %77 = vmatmul.f32.gmra.mxu0 %v38
  %v78 = vpop.f32.mrf.mxu0
  %v79 = vadd.f32 %v28, %v78
  %80 = vmatmul.f32.gmra.mxu0 %v41
  %v81 = vpop.f32.mrf.mxu0
  %v82 = vadd.f32 %v28, %v81
  %83 = vmatmul.f32.gmra.mxu0 %v44
  %v84 = vpop.f32.mrf.mxu0
  %v85 = vadd.f32 %v28, %v84
  %86 = vmatmul.f32.gmra.mxu0 %v47
  %v87 = vpop.f32.mrf.mxu0
  %v88 = vadd.f32 %v28, %v87
  %89 = vmatmul.f32.gmra.mxu0 %v50
  %v90 = vpop.f32.mrf.mxu0
  %v91 = vadd.f32 %v28, %v90
  %92 = vmatmul.f32.gmra.mxu0 %v53
  %v93 = vpop.f32.mrf.mxu0
  %v94 = vadd.f32 %v28, %v93
  %95 = vdwg.mxu0
  %96 = vst [vmem:[%s3] sm:$0xff] %v73
  %97 = vst [vmem:[%s3 + $0x8] sm:$0xff] %v76
  %98 = vst [vmem:[%s3 + $0x10] sm:$0xff] %v79
  %99 = vst [vmem:[%s3 + $0x18] sm:$0xff] %v82
  %100 = vst [vmem:[%s3 + $0x20] sm:$0xff] %v85
  %101 = vst [vmem:[%s3 + $0x28] sm:$0xff] %v88
  %102 = vst [vmem:[%s3 + $0x30] sm:$0xff] %v91
  %103 = vst [vmem:[%s3 + $0x38] sm:$0xff] %v94
  // Predicated region
  $region14: #{encoder_decoder_forward.8} parent=0 // pred_check
    _
  $region15: #{encoder_decoder_forward.8} parent=0 // pred_check_branch
    %105 = sbr.rel (0) target = $region17
  $region16: #{encoder_decoder_forward.8} parent=0 // pred_region
    _
  $region17: #{encoder_decoder_forward.8} parent=0 // pred_fallthru
    _
  // Predicated region
  $region18: #{encoder_decoder_forward.8} parent=0 // pred_check
    _
  $region19: #{encoder_decoder_forward.8} parent=0 // pred_check_branch
    %107 = sbr.rel (0) target = $region21
  $region20: #{encoder_decoder_forward.8} parent=0 // pred_region
    _
  $region21: #{encoder_decoder_forward.8} parent=0 // pred_fallthru
    _

// kernel: encoder_decoder_forward.9
$region0: #{encoder_decoder_forward.9}
  #allocation0 [shape = 'u32[]', space=smem, size = 0x4, offset = 0x4, fixed_abs, tag = 'smem constant byte address 0x4 - core index']
  #allocation1 [shape = 'u32[72,128]{1,0:T(1,128)}', space=vmem, size = 0x9000, scoped, tag = 'internal scratch']
  #allocation2 [shape = 'f32[8,32]{1,0:T(8,128)}', space=vmem, size = 0x1000, scoped, tag = 'scratch operand']
  %s0 = inlined_call_operand.vmem [shape: f32[16,8,96], index: 0, kind: input, shape index: {}]
  %s1 = inlined_call_operand.vmem [shape: f32[2,8,32], index: 1, kind: input, shape index: {}]
  %s2 = inlined_call_operand.vmem [shape: f32[2,32,96], index: 2, kind: input, shape index: {}]
  %s3 = inlined_call_operand.vmem [shape: f32[2,1,96], index: 3, kind: input, shape index: {}]
  %s4 = inlined_call_operand.vmem [shape: f32[16,8,32], index: 4, kind: output, shape index: {}]
  %s5 = sld [smem:[#allocation0]]
  $region53: #{encoder_decoder_forward.9} parent=0
    _
  %s7 = ssub.s32 1, %s5
  %s8 = scalar_select 0, %s7, %s5
  loop: start=0, step=1, limit=18
  $region2: #{encoder_decoder_forward.9} parent=0 // loop_pre_header
    _
  $region3: #{encoder_decoder_forward.9} parent=0 // loop_header
    %s10 = sphi 0, %s14
    %p11 = scmp.ge.s32.totalorder %s10, 18
    %s17 = sphi 0, %s29
    %s18 = sphi 0, %s25
    %s19 = sphi 0, %s17
    %s20 = sphi 0, %s18
    %s21 = sphi 0, %s19
    %s22 = sphi 0, %s20
    %s44 = sphi 0, %s46
    %s47 = sphi 0, %s44
    %s48 = sphi 0, %s47
    %s64 = sphi 0, %s48
    %s70 = sphi 0, %s72
    %s73 = sphi 0, %s70
    %s74 = sphi 0, %s73
    %s90 = sphi 0, %s74
    %s96 = sphi 0, %s98
    %s99 = sphi 0, %s96
    %s100 = sphi 0, %s99
    %s116 = sphi 0, %s100
    %s122 = sphi 0, %s124
    %s125 = sphi 0, %s122
    %s126 = sphi 0, %s125
    %s142 = sphi 0, %s126
    %s160 = sphi 0, %s162
    %s163 = sphi 0, %s160
    %s164 = sphi 0, %s163
    %s180 = sphi 0, %s164
  $region4: #{encoder_decoder_forward.9} parent=0 // loop_header_branch
    %13 = sbr.rel (%p11) target = $region8
  $region5: #{encoder_decoder_forward.9} parent=0 // loop_body
    %s15 = ssub.s32 %s10, 1
    %s16 = ssub.s32 %s10, 2
    %s23 = sadd.s32 1, %s18
    %p24 = scmp.ge.s32.totalorder %s23, 8
    %s25 = scalar_select %p24, 0, %s23
    %s26 = sadd.s32 1, %s17
    %s27 = scalar_select %p24, %s26, %s17
    %p28 = scmp.ge.s32.totalorder %s27, 2
    %s29 = scalar_select %p28, 0, %s27
    %s30 = smul.u32 %s17, 8
    %s31 = sadd.s32 %s30, %s18
    %s32 = smul.u32 %s18, 2
    %s33 = ssub.s32 7, %s32
    %s34 = smul.u32 %s17, %s33
    %s35 = sadd.s32 %s31, %s34
    %s36 = smul.u32 %s29, 8
    %s37 = sadd.s32 %s36, %s25
    %s38 = smul.u32 %s25, 2
    %s39 = ssub.s32 7, %s38
    %s40 = smul.u32 %s29, %s39
    %s41 = sadd.s32 %s37, %s40
    %s42 = ssub.s32 %s35, %s41
    %p43 = scmp.eq.s32.totalorder %s42, 0
    %s45 = sadd.s32 %s44, 1
    %s46 = scalar_select %p43, %s44, %s45
    %p49 = pneg %p43
    %p50 = scmp.eq.s32.totalorder %s10, 15
    %p51 = por %p49, %p50
    %p52 = scmp.ne.s32.totalorder %s44, %s47
    %p53 = scmp.eq.s32.totalorder %s10, 0
    %p54 = por %p52, %p53
    %p55 = scmp.ne.s32.totalorder %s44, %s47
    %p56 = scmp.eq.s32.totalorder %s15, 15
    %p57 = por %p55, %p56
    %p58 = scmp.ne.s32.totalorder %s47, %s48
    %p59 = scmp.eq.s32.totalorder %s15, 0
    %p60 = por %p58, %p59
    %p61 = scmp.ne.s32.totalorder %s47, %s48
    %p62 = scmp.eq.s32.totalorder %s16, 15
    %p63 = por %p61, %p62
    %p65 = scmp.ne.s32.totalorder %s48, %s64
    %p66 = scmp.eq.s32.totalorder %s16, 0
    %p67 = por %p65, %p66
    %s68 = ssub.s32 %s17, %s29
    %p69 = scmp.eq.s32.totalorder %s68, 0
    %s71 = sadd.s32 %s70, 1
    %s72 = scalar_select %p69, %s70, %s71
    %p75 = pneg %p69
    %p76 = scmp.eq.s32.totalorder %s10, 15
    %p77 = por %p75, %p76
    %p78 = scmp.ne.s32.totalorder %s70, %s73
    %p79 = scmp.eq.s32.totalorder %s10, 0
    %p80 = por %p78, %p79
    %p81 = scmp.ne.s32.totalorder %s70, %s73
    %p82 = scmp.eq.s32.totalorder %s15, 15
    %p83 = por %p81, %p82
    %p84 = scmp.ne.s32.totalorder %s73, %s74
    %p85 = scmp.eq.s32.totalorder %s15, 0
    %p86 = por %p84, %p85
    %p87 = scmp.ne.s32.totalorder %s73, %s74
    %p88 = scmp.eq.s32.totalorder %s16, 15
    %p89 = por %p87, %p88
    %p91 = scmp.ne.s32.totalorder %s74, %s90
    %p92 = scmp.eq.s32.totalorder %s16, 0
    %p93 = por %p91, %p92
    %s94 = ssub.s32 %s17, %s29
    %p95 = scmp.eq.s32.totalorder %s94, 0
    %s97 = sadd.s32 %s96, 1
    %s98 = scalar_select %p95, %s96, %s97
    %p101 = pneg %p95
    %p102 = scmp.eq.s32.totalorder %s10, 15
    %p103 = por %p101, %p102
    %p104 = scmp.ne.s32.totalorder %s96, %s99
    %p105 = scmp.eq.s32.totalorder %s10, 0
    %p106 = por %p104, %p105
    %p107 = scmp.ne.s32.totalorder %s96, %s99
    %p108 = scmp.eq.s32.totalorder %s15, 15
    %p109 = por %p107, %p108
    %p110 = scmp.ne.s32.totalorder %s99, %s100
    %p111 = scmp.eq.s32.totalorder %s15, 0
    %p112 = por %p110, %p111
    %p113 = scmp.ne.s32.totalorder %s99, %s100
    %p114 = scmp.eq.s32.totalorder %s16, 15
    %p115 = por %p113, %p114
    %p117 = scmp.ne.s32.totalorder %s100, %s116
    %p118 = scmp.eq.s32.totalorder %s16, 0
    %p119 = por %p117, %p118
    %s120 = ssub.s32 %s17, %s29
    %p121 = scmp.eq.s32.totalorder %s120, 0
    %s123 = sadd.s32 %s122, 1
    %s124 = scalar_select %p121, %s122, %s123
    %p127 = pneg %p121
    %p128 = scmp.eq.s32.totalorder %s10, 15
    %p129 = por %p127, %p128
    %p130 = scmp.ne.s32.totalorder %s122, %s125
    %p131 = scmp.eq.s32.totalorder %s10, 0
    %p132 = por %p130, %p131
    %p133 = scmp.ne.s32.totalorder %s122, %s125
    %p134 = scmp.eq.s32.totalorder %s15, 15
    %p135 = por %p133, %p134
    %p136 = scmp.ne.s32.totalorder %s125, %s126
    %p137 = scmp.eq.s32.totalorder %s15, 0
    %p138 = por %p136, %p137
    %p139 = scmp.ne.s32.totalorder %s125, %s126
    %p140 = scmp.eq.s32.totalorder %s16, 15
    %p141 = por %p139, %p140
    %p143 = scmp.ne.s32.totalorder %s126, %s142
    %p144 = scmp.eq.s32.totalorder %s16, 0
    %p145 = por %p143, %p144
    %s146 = smul.u32 %s17, 8
    %s147 = sadd.s32 %s146, %s18
    %s148 = smul.u32 %s18, 2
    %s149 = ssub.s32 7, %s148
    %s150 = smul.u32 %s17, %s149
    %s151 = sadd.s32 %s147, %s150
    %s152 = smul.u32 %s29, 8
    %s153 = sadd.s32 %s152, %s25
    %s154 = smul.u32 %s25, 2
    %s155 = ssub.s32 7, %s154
    %s156 = smul.u32 %s29, %s155
    %s157 = sadd.s32 %s153, %s156
    %s158 = ssub.s32 %s151, %s157
    %p159 = scmp.eq.s32.totalorder %s158, 0
    %s161 = sadd.s32 %s160, 1
    %s162 = scalar_select %p159, %s160, %s161
    %p165 = pneg %p159
    %p166 = scmp.eq.s32.totalorder %s10, 15
    %p167 = por %p165, %p166
    %p168 = scmp.ne.s32.totalorder %s160, %s163
    %p169 = scmp.eq.s32.totalorder %s10, 0
    %p170 = por %p168, %p169
    %p171 = scmp.ne.s32.totalorder %s160, %s163
    %p172 = scmp.eq.s32.totalorder %s15, 15
    %p173 = por %p171, %p172
    %p174 = scmp.ne.s32.totalorder %s163, %s164
    %p175 = scmp.eq.s32.totalorder %s15, 0
    %p176 = por %p174, %p175
    %p177 = scmp.ne.s32.totalorder %s163, %s164
    %p178 = scmp.eq.s32.totalorder %s16, 15
    %p179 = por %p177, %p178
    %p181 = scmp.ne.s32.totalorder %s164, %s180
    %p182 = scmp.eq.s32.totalorder %s16, 0
    %p183 = por %p181, %p182
    %p184 = scmp.le.s32.totalorder 1, %s10
    %p185 = scmp.lt.s32.totalorder %s10, 17
    %p186 = pnand %p184, %p185
    %p187 = pneg %p186
    // Predicated region
    $region9: #{encoder_decoder_forward.9} parent=5 // pred_check
      _
    $region10: #{encoder_decoder_forward.9} parent=5 // pred_check_branch
      %189 = sbr.rel (%p186) target = $region12
    $region11: #{encoder_decoder_forward.9} parent=5 // pred_region
      %s190 = ssub.s32 %s10, 1
    $region12: #{encoder_decoder_forward.9} parent=5 // pred_fallthru
      _
    %p191 = scmp.lt.s32.totalorder %s10, 16
    // Predicated region
    $region13: #{encoder_decoder_forward.9} parent=5 // pred_check
      %p192 = pneg %p191
    $region14: #{encoder_decoder_forward.9} parent=5 // pred_check_branch
      %194 = sbr.rel (%p192) target = $region16
    $region15: #{encoder_decoder_forward.9} parent=5 // pred_region
      // Predicated region
      $region17: #{encoder_decoder_forward.9} parent=15 // pred_check
        %p195 = pneg %p54
      $region18: #{encoder_decoder_forward.9} parent=15 // pred_check_branch
        %197 = sbr.rel (%p195) target = $region20
      $region19: #{encoder_decoder_forward.9} parent=15 // pred_region
        %s198 = smul.u32 %s17, 8
        %s199 = sadd.s32 %s198, %s18
        %s200 = smul.u32 %s18, 2
        %s201 = ssub.s32 7, %s200
        %s202 = smul.u32 %s17, %s201
        %s203 = sadd.s32 %s199, %s202
        %p204 = scmp.lt.s32.totalorder %s203, 15
        %s205 = scalar_select %p204, %s203, 15
        %s206 = smul.addr %s205, 8
        %s207 = scalar_lea.vmem %s0, %s206
        %s208 = smul.u32 %s17, 8
        %s209 = sadd.s32 %s208, %s18
        %s210 = smul.u32 %s18, 2
        %s211 = ssub.s32 7, %s210
        %s212 = smul.u32 %s17, %s211
        %s213 = sadd.s32 %s209, %s212
      $region20: #{encoder_decoder_forward.9} parent=15 // pred_fallthru
        _
      // Predicated region
      $region21: #{encoder_decoder_forward.9} parent=15 // pred_check
        %p214 = pneg %p80
      $region22: #{encoder_decoder_forward.9} parent=15 // pred_check_branch
        %216 = sbr.rel (%p214) target = $region24
      $region23: #{encoder_decoder_forward.9} parent=15 // pred_region
        %p217 = scmp.lt.s32.totalorder %s17, 1
        %s218 = scalar_select %p217, %s17, 1
        %s219 = smul.addr %s218, 8
        %s220 = scalar_lea.vmem %s1, %s219
      $region24: #{encoder_decoder_forward.9} parent=15 // pred_fallthru
        _
      // Predicated region
      $region25: #{encoder_decoder_forward.9} parent=15 // pred_check
        %p221 = pneg %p106
      $region26: #{encoder_decoder_forward.9} parent=15 // pred_check_branch
        %223 = sbr.rel (%p221) target = $region28
      $region27: #{encoder_decoder_forward.9} parent=15 // pred_region
        %p224 = scmp.lt.s32.totalorder %s17, 1
        %s225 = scalar_select %p224, %s17, 1
        %s226 = smul.addr %s225, 4
        %s227 = smul.addr %s226, 8
        %s228 = scalar_lea.vmem %s2, %s227
      $region28: #{encoder_decoder_forward.9} parent=15 // pred_fallthru
        _
      // Predicated region
      $region29: #{encoder_decoder_forward.9} parent=15 // pred_check
        %p229 = pneg %p132
      $region30: #{encoder_decoder_forward.9} parent=15 // pred_check_branch
        %231 = sbr.rel (%p229) target = $region32
      $region31: #{encoder_decoder_forward.9} parent=15 // pred_region
        %p232 = scmp.lt.s32.totalorder %s17, 1
        %s233 = scalar_select %p232, %s17, 1
        %s234 = scalar_lea.vmem %s3, %s233
      $region32: #{encoder_decoder_forward.9} parent=15 // pred_fallthru
        _
    $region16: #{encoder_decoder_forward.9} parent=5 // pred_fallthru
      _
    %p235 = scmp.le.s32.totalorder 1, %s10
    %p236 = scmp.lt.s32.totalorder %s10, 17
    %p237 = pnand %p235, %p236
    %p238 = pneg %p237
    // Predicated region
    $region33: #{encoder_decoder_forward.9} parent=5 // pred_check
      _
    $region34: #{encoder_decoder_forward.9} parent=5 // pred_check_branch
      %240 = sbr.rel (%p237) target = $region36
    $region35: #{encoder_decoder_forward.9} parent=5 // pred_region
      %s241 = ssub.s32 %s10, 1
      %s242 = smul.u32 %s19, 8
      %s243 = sadd.s32 %s242, %s20
      %s244 = smul.u32 %s20, 2
      %s245 = ssub.s32 7, %s244
      %s246 = smul.u32 %s19, %s245
      %s247 = sadd.s32 %s243, %s246
      %p248 = scmp.lt.s32.totalorder %s247, 15
      %s249 = scalar_select %p248, %s247, 15
      %s250 = smul.addr %s249, 8
      %s251 = scalar_lea.vmem %s0, %s250
      %p252 = pneg %p60
      %p253 = pneg %p57
      %p254 = scmp.lt.s32.totalorder %s19, 1
      %s255 = scalar_select %p254, %s19, 1
      %s256 = smul.addr %s255, 8
      %s257 = scalar_lea.vmem %s1, %s256
      %p258 = pneg %p86
      %p259 = pneg %p83
      %p260 = scmp.lt.s32.totalorder %s19, 1
      %s261 = scalar_select %p260, %s19, 1
      %s262 = smul.addr %s261, 4
      %s263 = smul.addr %s262, 8
      %s264 = scalar_lea.vmem %s2, %s263
      %p265 = pneg %p112
      %p266 = pneg %p109
      %p267 = scmp.lt.s32.totalorder %s19, 1
      %s268 = scalar_select %p267, %s19, 1
      %s269 = scalar_lea.vmem %s3, %s268
      %p270 = pneg %p138
      %p271 = pneg %p135
      %p272 = pneg %p176
      %p273 = pneg %p173
      %s274 = smul.u32 %s19, 8
      %s275 = sadd.s32 %s274, %s20
      %s276 = smul.u32 %s20, 2
      %s277 = ssub.s32 7, %s276
      %s278 = smul.u32 %s19, %s277
      %s279 = sadd.s32 %s275, %s278
      %p280 = scmp.lt.s32.totalorder %s279, 15
      %s281 = scalar_select %p280, %s279, 15
      %s282 = smul.addr %s281, 8
      %s283 = scalar_lea.vmem %s4, %s282
      %s284 = smul.u32 %s19, 8
      %s285 = sadd.s32 %s284, %s20
      %s286 = smul.u32 %s20, 2
      %s287 = ssub.s32 7, %s286
      %s288 = smul.u32 %s19, %s287
      %s289 = sadd.s32 %s285, %s288
      %p290 = scmp.lt.s32.totalorder %s289, 15
      %s291 = scalar_select %p290, %s289, 15
      %s292 = smul.addr %s291, 8
      %s293 = scalar_lea.vmem %s0, %s292
      %s294 = smul.u32 %s19, 8
      %s295 = sadd.s32 %s294, %s20
      %s296 = smul.u32 %s20, 2
      %s297 = ssub.s32 7, %s296
      %s298 = smul.u32 %s19, %s297
      %s299 = sadd.s32 %s295, %s298
      %p300 = scmp.lt.s32.totalorder %s19, 1
      %s301 = scalar_select %p300, %s19, 1
      %s302 = smul.addr %s301, 8
      %s303 = scalar_lea.vmem %s1, %s302
      %p304 = scmp.lt.s32.totalorder %s19, 1
      %s305 = scalar_select %p304, %s19, 1
      %s306 = smul.addr %s305, 4
      %s307 = smul.addr %s306, 8
      %s308 = scalar_lea.vmem %s2, %s307
      %p309 = scmp.lt.s32.totalorder %s19, 1
      %s310 = scalar_select %p309, %s19, 1
      %s311 = scalar_lea.vmem %s3, %s310
      %s312 = smul.u32 %s19, 8
      %s313 = sadd.s32 %s312, %s20
      %s314 = smul.u32 %s20, 2
      %s315 = ssub.s32 7, %s314
      %s316 = smul.u32 %s19, %s315
      %s317 = sadd.s32 %s313, %s316
      %p318 = scmp.lt.s32.totalorder %s317, 15
      %s319 = scalar_select %p318, %s317, 15
      %s320 = smul.addr %s319, 8
      %s321 = scalar_lea.vmem %s4, %s320
      %s322 = smul.u32 %s19, 8
      %s323 = sadd.s32 %s322, %s20
      %s324 = smul.u32 %s20, 2
      %s325 = ssub.s32 7, %s324
      %s326 = smul.u32 %s19, %s325
      %s327 = sadd.s32 %s323, %s326
      %p328 = scmp.eq.s32.totalorder %s20, 0
      // Predicated region
      $region37: #{encoder_decoder_forward.9} parent=35 // pred_check
        %p329 = pneg %p328
      $region38: #{encoder_decoder_forward.9} parent=35 // pred_check_branch
        %331 = sbr.rel (%p329) target = $region40
      $region39: #{encoder_decoder_forward.9} parent=35 // pred_region
        %v332 = vld [vmem:[%s303] sm:$0xff]
        %vm333 = vcmask 261120
        %334 = vst.msk [vmem:[#allocation2] sm:$0xff] %vm333, %v332
      $region40: #{encoder_decoder_forward.9} parent=35 // pred_fallthru
        _
      %v335 = vld [vmem:[#allocation2] sm:$0xff]
      %v336 = vld [vmem:[%s293] sm:$0xff]
      %v337 = vld [vmem:[%s308] sm:$0xff]
      %v338 = vld [vmem:[%s308 + $0x8] sm:$0xff]
      %v339 = vld [vmem:[%s308 + $0x10] sm:$0xff]
      %v340 = vld [vmem:[%s308 + $0x18] sm:$0xff]
      %v341 = vld [vmem:[%s311] sm:$0x1]
      %v343 = vperm.slane %v341, 0
      %vm345 = vcmask 261120
      %v347 = vsel %vm345, %v335, 0
      %349 = vmatpush.msra.mxu0 0.0
      %350 = vmatpush.msra.mxu0 0.0
      %351 = vmatpush.msra.mxu0 0.0
      %352 = vmatpush.msra.mxu0 0.0
      %353 = vmatpush.msra.mxu0 0.0
      %354 = vmatpush.msra.mxu0 0.0
      %355 = vmatpush.msra.mxu0 0.0
      %356 = vmatpush.msra.mxu0 0.0
      %357 = vmatpush.msra.mxu0 0.0
      %358 = vmatpush.msra.mxu0 0.0
      %359 = vmatpush.msra.mxu0 0.0
      %360 = vmatpush.msra.mxu0 0.0
      %361 = vmatpush.msra.mxu0 %v340
      %362 = vmatpush.msra.mxu0 %v339
      %363 = vmatpush.msra.mxu0 %v338
      %364 = vmatpush.msra.mxu0 %v337
      %365 = vmatmul.f32.gmra.mxu0 %v347
      %v366 = vpop.f32.mrf.mxu0
      %v367 = vadd.f32 %v343, %v366
      %368 = vdwg.mxu0
      %v369 = vadd.f32 %v336, %v367
      %v370 = vxor.u32 %v369, 2147483648
      %v371 = vmul.f32 %v370, 1.442695
      %v372 = vpow.pop %v371
      %v373 = vadd.f32 %v372, 1.0
      %v374 = vrcp.pop %v373
      %v375 = vmul.f32 %v373, %v374
      %v376 = vsub.f32 1.0, %v375
      %v377 = vmul.f32 %v374, %v376
      %v378 = vadd.f32 %v374, %v377
      %vm379 = vweird.f32 %v373
      %vm380 = vweird.f32 %v374
      %vm381 = vmor %vm379, %vm380
      %v382 = vsel %vm381, %v374, %v378
      %v383 = vand.u32 2147483647, %v373
      %vm384 = vcmp.eq.f32.partialorder %v383, 8.507059e+37
      %v385 = vand.u32 %v373, 2147483648
      %v386 = vor.u32 1.1754944e-38, %v385
      %v387 = vsel %vm384, %v386, %v382
      %v388 = vmul.f32 1.0, %v387
      %390 = vrot.lane.b32.xlu0 %v367, 64
      %v391 = vpop.permute.xlu0 %390
      %v393 = vmul.f32 %v388, %v391
      %395 = vrot.lane.b32.xlu0 %v393, 64
      %v396 = vpop.permute.xlu0 %395
      %v398 = vadd.f32 %v336, %v396
      %v399 = vtanh.pop %v398
      %v400 = vsub.f32 1.0, %v388
      %402 = vrot.lane.b32.xlu0 %v399, 96
      %v403 = vpop.permute.xlu0 %402
      %v405 = vmul.f32 %v400, %v403
      %406 = vrot.lane.b32.xlu0 %v335, 32
      %v407 = vpop.permute.xlu0 %406
      %v409 = vmul.f32 %v388, %v407
      %v410 = vadd.f32 %v405, %v409
      %412 = vrot.lane.b32.xlu0 %v410, 96
      %v413 = vpop.permute.xlu0 %412
      %415 = vst.msk [vmem:[#allocation2] sm:$0xff] %vm345, %v413
      %416 = vst.msk [vmem:[%s321] sm:$0xff] %vm345, %v413
      %s417 = smul.u32 %s19, 8
      %s418 = sadd.s32 %s417, %s20
      %s419 = smul.u32 %s20, 2
      %s420 = ssub.s32 7, %s419
      %s421 = smul.u32 %s19, %s420
      %s422 = sadd.s32 %s418, %s421
      %p423 = scmp.lt.s32.totalorder %s422, 15
      %s424 = scalar_select %p423, %s422, 15
      %s425 = smul.addr %s424, 8
      %s426 = scalar_lea.vmem %s4, %s425
      // Predicated region
      $region41: #{encoder_decoder_forward.9} parent=35 // pred_check
        %p427 = pneg %p173
      $region42: #{encoder_decoder_forward.9} parent=35 // pred_check_branch
        %429 = sbr.rel (%p427) target = $region44
      $region43: #{encoder_decoder_forward.9} parent=35 // pred_region
        %s430 = smul.u32 %s19, 8
        %s431 = sadd.s32 %s430, %s20
        %s432 = smul.u32 %s20, 2
        %s433 = ssub.s32 7, %s432
        %s434 = smul.u32 %s19, %s433
        %s435 = sadd.s32 %s431, %s434
      $region44: #{encoder_decoder_forward.9} parent=35 // pred_fallthru
        _
    $region36: #{encoder_decoder_forward.9} parent=5 // pred_fallthru
      _
    %p436 = scmp.le.s32.totalorder 2, %s10
    // Predicated region
    $region45: #{encoder_decoder_forward.9} parent=5 // pred_check
      %p437 = pneg %p436
    $region46: #{encoder_decoder_forward.9} parent=5 // pred_check_branch
      %439 = sbr.rel (%p437) target = $region48
    $region47: #{encoder_decoder_forward.9} parent=5 // pred_region
      %s440 = ssub.s32 %s10, 2
      // Predicated region
      $region49: #{encoder_decoder_forward.9} parent=47 // pred_check
        %p441 = pneg %p179
      $region50: #{encoder_decoder_forward.9} parent=47 // pred_check_branch
        %443 = sbr.rel (%p441) target = $region52
      $region51: #{encoder_decoder_forward.9} parent=47 // pred_region
        %s444 = smul.u32 %s21, 8
        %s445 = sadd.s32 %s444, %s22
        %s446 = smul.u32 %s22, 2
        %s447 = ssub.s32 7, %s446
        %s448 = smul.u32 %s21, %s447
        %s449 = sadd.s32 %s445, %s448
        %p450 = scmp.lt.s32.totalorder %s449, 15
        %s451 = scalar_select %p450, %s449, 15
        %s452 = smul.addr %s451, 8
        %s453 = scalar_lea.vmem %s4, %s452
      $region52: #{encoder_decoder_forward.9} parent=47 // pred_fallthru
        _
    $region48: #{encoder_decoder_forward.9} parent=5 // pred_fallthru
      _
  $region6: #{encoder_decoder_forward.9} parent=0 // loop_footer
    %s14 = sadd.s32 1, %s10
  $region7: #{encoder_decoder_forward.9} parent=0 // loop_footer_branch
    %9 = sbr.rel target = $region3
  $region8: #{encoder_decoder_forward.9} parent=0 // loop_exit
    _

// kernel: encoder_decoder_forward.10
$region0: #{encoder_decoder_forward.10}
  #allocation0 [shape = 'u32[]', space=smem, size = 0x4, offset = 0x4, fixed_abs, tag = 'smem constant byte address 0x4 - core index']
  #allocation1 [shape = 'u32[72,128]{1,0:T(1,128)}', space=vmem, size = 0x9000, scoped, tag = 'internal scratch']
  %s0 = inlined_call_operand.vmem [shape: f32[8,8,32], index: 0, kind: input, shape index: {}]
  %s1 = inlined_call_operand.vmem [shape: f32[8,8,32], index: 1, kind: input, shape index: {}]
  %s2 = inlined_call_operand.vmem [shape: f32[1,32], index: 2, kind: input, shape index: {}]
  %s3 = inlined_call_operand.vmem [shape: f32[1,32], index: 3, kind: input, shape index: {}]
  %s4 = inlined_call_operand.vmem [shape: f32[8,8], index: 4, kind: input, shape index: {}]
  %s5 = inlined_call_operand.vmem [shape: f32[32,32], index: 5, kind: input, shape index: {}]
  %s6 = inlined_call_operand.vmem [shape: f32[32,32], index: 6, kind: input, shape index: {}]
  %s7 = inlined_call_operand.vmem [shape: f32[1,32], index: 7, kind: input, shape index: {}]
  %s8 = inlined_call_operand.vmem [shape: f32[8,1], index: 8, kind: input, shape index: {}]
  %s9 = inlined_call_operand.vmem [shape: f32[8,32], index: 9, kind: output, shape index: {}]
  %s10 = sld [smem:[#allocation0]]
  $region46: #{encoder_decoder_forward.10} parent=0
    _
  %s12 = ssub.s32 1, %s10
  %s13 = scalar_select 0, %s12, %s10
  // Predicated region
  $region2: #{encoder_decoder_forward.10} parent=0 // pred_check
    _
  $region3: #{encoder_decoder_forward.10} parent=0 // pred_check_branch
    %15 = sbr.rel (0) target = $region5
  $region4: #{encoder_decoder_forward.10} parent=0 // pred_region
    _
  $region5: #{encoder_decoder_forward.10} parent=0 // pred_fallthru
    _
  // Predicated region
  $region6: #{encoder_decoder_forward.10} parent=0 // pred_check
    _
  $region7: #{encoder_decoder_forward.10} parent=0 // pred_check_branch
    %17 = sbr.rel (0) target = $region9
  $region8: #{encoder_decoder_forward.10} parent=0 // pred_region
    _
  $region9: #{encoder_decoder_forward.10} parent=0 // pred_fallthru
    _
  // Predicated region
  $region10: #{encoder_decoder_forward.10} parent=0 // pred_check
    _
  $region11: #{encoder_decoder_forward.10} parent=0 // pred_check_branch
    %19 = sbr.rel (0) target = $region13
  $region12: #{encoder_decoder_forward.10} parent=0 // pred_region
    _
  $region13: #{encoder_decoder_forward.10} parent=0 // pred_fallthru
    _
  // Predicated region
  $region14: #{encoder_decoder_forward.10} parent=0 // pred_check
    _
  $region15: #{encoder_decoder_forward.10} parent=0 // pred_check_branch
    %21 = sbr.rel (0) target = $region17
  $region16: #{encoder_decoder_forward.10} parent=0 // pred_region
    _
  $region17: #{encoder_decoder_forward.10} parent=0 // pred_fallthru
    _
  // Predicated region
  $region18: #{encoder_decoder_forward.10} parent=0 // pred_check
    _
  $region19: #{encoder_decoder_forward.10} parent=0 // pred_check_branch
    %23 = sbr.rel (0) target = $region21
  $region20: #{encoder_decoder_forward.10} parent=0 // pred_region
    _
  $region21: #{encoder_decoder_forward.10} parent=0 // pred_fallthru
    _
  // Predicated region
  $region22: #{encoder_decoder_forward.10} parent=0 // pred_check
    _
  $region23: #{encoder_decoder_forward.10} parent=0 // pred_check_branch
    %25 = sbr.rel (0) target = $region25
  $region24: #{encoder_decoder_forward.10} parent=0 // pred_region
    _
  $region25: #{encoder_decoder_forward.10} parent=0 // pred_fallthru
    _
  // Predicated region
  $region26: #{encoder_decoder_forward.10} parent=0 // pred_check
    _
  $region27: #{encoder_decoder_forward.10} parent=0 // pred_check_branch
    %27 = sbr.rel (0) target = $region29
  $region28: #{encoder_decoder_forward.10} parent=0 // pred_region
    _
  $region29: #{encoder_decoder_forward.10} parent=0 // pred_fallthru
    _
  // Predicated region
  $region30: #{encoder_decoder_forward.10} parent=0 // pred_check
    _
  $region31: #{encoder_decoder_forward.10} parent=0 // pred_check_branch
    %29 = sbr.rel (0) target = $region33
  $region32: #{encoder_decoder_forward.10} parent=0 // pred_region
    _
  $region33: #{encoder_decoder_forward.10} parent=0 // pred_fallthru
    _
  // Predicated region
  $region34: #{encoder_decoder_forward.10} parent=0 // pred_check
    _
  $region35: #{encoder_decoder_forward.10} parent=0 // pred_check_branch
    %31 = sbr.rel (0) target = $region37
  $region36: #{encoder_decoder_forward.10} parent=0 // pred_region
    _
  $region37: #{encoder_decoder_forward.10} parent=0 // pred_fallthru
    _
  %v32 = vld [vmem:[%s0] sm:$0xff]
  %v33 = vld [vmem:[%s0 + $0x8] sm:$0xff]
  %v34 = vld [vmem:[%s0 + $0x10] sm:$0xff]
  %v35 = vld [vmem:[%s0 + $0x18] sm:$0xff]
  %v36 = vld [vmem:[%s0 + $0x20] sm:$0xff]
  %v37 = vld [vmem:[%s0 + $0x28] sm:$0xff]
  %v38 = vld [vmem:[%s0 + $0x30] sm:$0xff]
  %v39 = vld [vmem:[%s0 + $0x38] sm:$0xff]
  %v40 = vld [vmem:[%s1] sm:$0xff]
  %v41 = vld [vmem:[%s1 + $0x8] sm:$0xff]
  %v42 = vld [vmem:[%s1 + $0x10] sm:$0xff]
  %v43 = vld [vmem:[%s1 + $0x18] sm:$0xff]
  %v44 = vld [vmem:[%s1 + $0x20] sm:$0xff]
  %v45 = vld [vmem:[%s1 + $0x28] sm:$0xff]
  %v46 = vld [vmem:[%s1 + $0x30] sm:$0xff]
  %v47 = vld [vmem:[%s1 + $0x38] sm:$0xff]
  %v48 = vld [vmem:[%s4] sm:$0xff]
  %v49 = vld [vmem:[%s2] sm:$0x1]
  %v51 = vperm.slane %v49, 0
  %v53 = vmul.f32 %v32, %v51
  %v54 = vmul.f32 %v33, %v51
  %v55 = vmul.f32 %v34, %v51
  %v56 = vmul.f32 %v35, %v51
  %v57 = vmul.f32 %v36, %v51
  %v58 = vmul.f32 %v37, %v51
  %v59 = vmul.f32 %v38, %v51
  %v60 = vmul.f32 %v39, %v51
  %vm61 = vcmask 261120
  %v62 = vsel %vm61, %v53, 0.0
  %63 = vadd.xlane.f32.xlu0 %v62
  %v64 = vpop.xlane.xlu0 %63
  %v65 = vsel %vm61, %v54, 0.0
  %66 = vadd.xlane.f32.xlu0 %v65
  %v67 = vpop.xlane.xlu0 %66
  %v68 = vsel %vm61, %v55, 0.0
  %69 = vadd.xlane.f32.xlu0 %v68
  %v70 = vpop.xlane.xlu0 %69
  %v71 = vsel %vm61, %v56, 0.0
  %72 = vadd.xlane.f32.xlu0 %v71
  %v73 = vpop.xlane.xlu0 %72
  %v74 = vsel %vm61, %v57, 0.0
  %75 = vadd.xlane.f32.xlu0 %v74
  %v76 = vpop.xlane.xlu0 %75
  %v77 = vsel %vm61, %v58, 0.0
  %78 = vadd.xlane.f32.xlu0 %v77
  %v79 = vpop.xlane.xlu0 %78
  %v80 = vsel %vm61, %v59, 0.0
  %81 = vadd.xlane.f32.xlu0 %v80
  %v82 = vpop.xlane.xlu0 %81
  %v83 = vsel %vm61, %v60, 0.0
  %84 = vadd.xlane.f32.xlu0 %v83
  %v85 = vpop.xlane.xlu0 %84
  %v86 = vld [vmem:[%s3] sm:$0x1]
  %v88 = vperm.slane %v86, 0
  %v90 = vmul.f32 %v40, %v88
  %v91 = vmul.f32 %v41, %v88
  %v92 = vmul.f32 %v42, %v88
  %v93 = vmul.f32 %v43, %v88
  %v94 = vmul.f32 %v44, %v88
  %v95 = vmul.f32 %v45, %v88
  %v96 = vmul.f32 %v46, %v88
  %v97 = vmul.f32 %v47, %v88
  %v98 = vsel %vm61, %v90, 0.0
  %99 = vadd.xlane.f32.xlu0 %v98
  %v100 = vpop.xlane.xlu0 %99
  %v101 = vsel %vm61, %v91, 0.0
  %102 = vadd.xlane.f32.xlu0 %v101
  %v103 = vpop.xlane.xlu0 %102
  %v104 = vsel %vm61, %v92, 0.0
  %105 = vadd.xlane.f32.xlu0 %v104
  %v106 = vpop.xlane.xlu0 %105
  %v107 = vsel %vm61, %v93, 0.0
  %108 = vadd.xlane.f32.xlu0 %v107
  %v109 = vpop.xlane.xlu0 %108
  %v110 = vsel %vm61, %v94, 0.0
  %111 = vadd.xlane.f32.xlu0 %v110
  %v112 = vpop.xlane.xlu0 %111
  %v113 = vsel %vm61, %v95, 0.0
  %114 = vadd.xlane.f32.xlu0 %v113
  %v115 = vpop.xlane.xlu0 %114
  %v116 = vsel %vm61, %v96, 0.0
  %117 = vadd.xlane.f32.xlu0 %v116
  %v118 = vpop.xlane.xlu0 %117
  %v119 = vsel %vm61, %v97, 0.0
  %120 = vadd.xlane.f32.xlu0 %v119
  %v121 = vpop.xlane.xlu0 %120
  %v122 = vadd.f32 %v64, %v100
  %v123 = vadd.f32 %v67, %v103
  %v124 = vadd.f32 %v70, %v106
  %v125 = vadd.f32 %v73, %v109
  %v126 = vadd.f32 %v76, %v112
  %v127 = vadd.f32 %v79, %v115
  %v128 = vadd.f32 %v82, %v118
  %v129 = vadd.f32 %v85, %v121
  %vm130 = vcmp.gt.f32.partialorder %v48, 0.0
  %v139 = vlaneseq
  %v140 = vand.u32 %v139, 127
  %v141 = vperm.slane %v122, %v140
  %v142 = vperm.slane %v123, %v140
  %v143 = vperm.slane %v124, %v140
  %v144 = vperm.slane %v125, %v140
  %v145 = vperm.slane %v126, %v140
  %v146 = vperm.slane %v127, %v140
  %v147 = vperm.slane %v128, %v140
  %v148 = vperm.slane %v129, %v140
  %vm149 = vcmask 1041409
  %v150 = vsel %vm149, %v142, %v141
  %vm151 = vcmask 1042434
  %v152 = vsel %vm151, %v143, %v150
  %vm153 = vcmask 1043459
  %v154 = vsel %vm153, %v144, %v152
  %vm155 = vcmask 1044484
  %v156 = vsel %vm155, %v145, %v154
  %vm157 = vcmask 1045509
  %v158 = vsel %vm157, %v146, %v156
  %vm159 = vcmask 1046534
  %v160 = vsel %vm159, %v147, %v158
  %vm161 = vcmask 1047559
  %v162 = vsel %vm161, %v148, %v160
  %v164 = vsel %vm130, %v162, -1e+30
  %vm165 = vcmask 64512
  %v166 = vsel %vm165, %v164, -inf
  %v167 = vrot.slane %v166, 4
  %v168 = vmax.f32 %v166, %v167
  %v169 = vrot.slane %v168, 2
  %v170 = vmax.f32 %v168, %v169
  %v171 = vrot.slane %v170, 1
  %v172 = vmax.f32 %v170, %v171
  %v173 = vsub.f32 %v164, %v172
  %v174 = vmul.f32 %v173, 1.442695
  %v175 = vpow.pop %v174
  %v176 = vmul.f32 %v175, %v48
  %v177 = vsel %vm165, %v176, 0.0
  %v178 = vrot.slane %v177, 4
  %v179 = vadd.f32 %v177, %v178
  %v180 = vrot.slane %v179, 2
  %v181 = vadd.f32 %v179, %v180
  %v182 = vrot.slane %v181, 1
  %v183 = vadd.f32 %v181, %v182
  %v184 = vmax.f32 %v183, 1e-30
  %v185 = vrcp.pop %v184
  %v186 = vmul.f32 %v176, %v185
  %v187 = vperm.slane %v186, 0
  %v188 = vlaneseq
  %v189 = vshrl.u32 %v188, 7
  %191 = vset.pattern.permute.xlu0 %v189
  %192 = vperm.xlu0 %191, %v187
  %v193 = vpop.permute.xlu0 %192
  %v194 = vperm.slane %v186, 1
  %v195 = vlaneseq
  %v196 = vshrl.u32 %v195, 7
  %198 = vset.pattern.permute.xlu0 %v196
  %199 = vperm.xlu0 %198, %v194
  %v200 = vpop.permute.xlu0 %199
  %v201 = vperm.slane %v186, 2
  %v202 = vlaneseq
  %v203 = vshrl.u32 %v202, 7
  %205 = vset.pattern.permute.xlu0 %v203
  %206 = vperm.xlu0 %205, %v201
  %v207 = vpop.permute.xlu0 %206
  %v208 = vperm.slane %v186, 3
  %v209 = vlaneseq
  %v210 = vshrl.u32 %v209, 7
  %212 = vset.pattern.permute.xlu0 %v210
  %213 = vperm.xlu0 %212, %v208
  %v214 = vpop.permute.xlu0 %213
  %v215 = vperm.slane %v186, 4
  %v216 = vlaneseq
  %v217 = vshrl.u32 %v216, 7
  %219 = vset.pattern.permute.xlu0 %v217
  %220 = vperm.xlu0 %219, %v215
  %v221 = vpop.permute.xlu0 %220
  %v222 = vperm.slane %v186, 5
  %v223 = vlaneseq
  %v224 = vshrl.u32 %v223, 7
  %226 = vset.pattern.permute.xlu0 %v224
  %227 = vperm.xlu0 %226, %v222
  %v228 = vpop.permute.xlu0 %227
  %v229 = vperm.slane %v186, 6
  %v230 = vlaneseq
  %v231 = vshrl.u32 %v230, 7
  %233 = vset.pattern.permute.xlu0 %v231
  %234 = vperm.xlu0 %233, %v229
  %v235 = vpop.permute.xlu0 %234
  %v236 = vperm.slane %v186, 7
  %v237 = vlaneseq
  %v238 = vshrl.u32 %v237, 7
  %240 = vset.pattern.permute.xlu0 %v238
  %241 = vperm.xlu0 %240, %v236
  %v242 = vpop.permute.xlu0 %241
  %v243 = vmul.f32 %v193, %v32
  %v244 = vmul.f32 %v200, %v33
  %v245 = vmul.f32 %v207, %v34
  %v246 = vmul.f32 %v214, %v35
  %v247 = vmul.f32 %v221, %v36
  %v248 = vmul.f32 %v228, %v37
  %v249 = vmul.f32 %v235, %v38
  %v250 = vmul.f32 %v242, %v39
  %v251 = vsel %vm61, %v243, 0.0
  %v252 = vsel %vm61, %v244, 0.0
  %v253 = vadd.f32 %v251, %v252
  %v254 = vsel %vm61, %v245, 0.0
  %v255 = vadd.f32 %v253, %v254
  %v256 = vsel %vm61, %v246, 0.0
  %v257 = vadd.f32 %v255, %v256
  %v258 = vsel %vm61, %v247, 0.0
  %v259 = vadd.f32 %v257, %v258
  %v260 = vsel %vm61, %v248, 0.0
  %v261 = vadd.f32 %v259, %v260
  %v262 = vsel %vm61, %v249, 0.0
  %v263 = vadd.f32 %v261, %v262
  %v264 = vsel %vm61, %v250, 0.0
  %v265 = vadd.f32 %v263, %v264
  %v266 = vmul.f32 %v193, %v40
  %v267 = vmul.f32 %v200, %v41
  %v268 = vmul.f32 %v207, %v42
  %v269 = vmul.f32 %v214, %v43
  %v270 = vmul.f32 %v221, %v44
  %v271 = vmul.f32 %v228, %v45
  %v272 = vmul.f32 %v235, %v46
  %v273 = vmul.f32 %v242, %v47
  %v274 = vsel %vm61, %v266, 0.0
  %v275 = vsel %vm61, %v267, 0.0
  %v276 = vadd.f32 %v274, %v275
  %v277 = vsel %vm61, %v268, 0.0
  %v278 = vadd.f32 %v276, %v277
  %v279 = vsel %vm61, %v269, 0.0
  %v280 = vadd.f32 %v278, %v279
  %v281 = vsel %vm61, %v270, 0.0
  %v282 = vadd.f32 %v280, %v281
  %v283 = vsel %vm61, %v271, 0.0
  %v284 = vadd.f32 %v282, %v283
  %v285 = vsel %vm61, %v272, 0.0
  %v286 = vadd.f32 %v284, %v285
  %v287 = vsel %vm61, %v273, 0.0
  %v288 = vadd.f32 %v286, %v287
  %v289 = vld [vmem:[%s5] sm:$0xff]
  %v290 = vld [vmem:[%s5 + $0x8] sm:$0xff]
  %v291 = vld [vmem:[%s5 + $0x10] sm:$0xff]
  %v292 = vld [vmem:[%s5 + $0x18] sm:$0xff]
  %v293 = vld [vmem:[%s6] sm:$0xff]
  %v294 = vld [vmem:[%s6 + $0x8] sm:$0xff]
  %v295 = vld [vmem:[%s6 + $0x10] sm:$0xff]
  %v296 = vld [vmem:[%s6 + $0x18] sm:$0xff]
  %v298 = vsel %vm61, %v288, 0
  %300 = vmatpush.msra.mxu0 0.0
  %301 = vmatpush.msra.mxu0 0.0
  %302 = vmatpush.msra.mxu0 0.0
  %303 = vmatpush.msra.mxu0 0.0
  %304 = vmatpush.msra.mxu0 0.0
  %305 = vmatpush.msra.mxu0 0.0
  %306 = vmatpush.msra.mxu0 0.0
  %307 = vmatpush.msra.mxu0 0.0
  %308 = vmatpush.msra.mxu0 0.0
  %309 = vmatpush.msra.mxu0 0.0
  %310 = vmatpush.msra.mxu0 0.0
  %311 = vmatpush.msra.mxu0 0.0
  %312 = vmatpush.msra.mxu0 %v296
  %313 = vmatpush.msra.mxu0 %v295
  %314 = vmatpush.msra.mxu0 %v294
  %315 = vmatpush.msra.mxu0 %v293
  %316 = vmatmul.f32.gmra.mxu0 %v298
  %v317 = vpop.f32.mrf.mxu0
  %v318 = vadd.f32 0.0, %v317
  %319 = vdwg.mxu0
  %v321 = vsel %vm61, %v265, 0
  %323 = vmatpush.msra.mxu0 0.0
  %324 = vmatpush.msra.mxu0 0.0
  %325 = vmatpush.msra.mxu0 0.0
  %326 = vmatpush.msra.mxu0 0.0
  %327 = vmatpush.msra.mxu0 0.0
  %328 = vmatpush.msra.mxu0 0.0
  %329 = vmatpush.msra.mxu0 0.0
  %330 = vmatpush.msra.mxu0 0.0
  %331 = vmatpush.msra.mxu0 0.0
  %332 = vmatpush.msra.mxu0 0.0
  %333 = vmatpush.msra.mxu0 0.0
  %334 = vmatpush.msra.mxu0 0.0
  %335 = vmatpush.msra.mxu0 %v292
  %336 = vmatpush.msra.mxu0 %v291
  %337 = vmatpush.msra.mxu0 %v290
  %338 = vmatpush.msra.mxu0 %v289
  %339 = vmatmul.f32.gmra.mxu0 %v321
  %v340 = vpop.f32.mrf.mxu0
  %v341 = vadd.f32 %v318, %v340
  %342 = vdwg.mxu0
  %v343 = vld [vmem:[%s7] sm:$0x1]
  %v345 = vperm.slane %v343, 0
  %v347 = vadd.f32 %v341, %v345
  %v348 = vld [vmem:[%s8] sm:$0xff]
  %350 = vset.pattern.permute.xlu0 0
  %351 = vperm.xlu0 %350, %v348
  %v352 = vpop.permute.xlu0 %351
  %v354 = vmul.f32 %v347, %v352
  %355 = vst.msk [vmem:[%s9] sm:$0xff] %vm61, %v354
  // Predicated region
  $region38: #{encoder_decoder_forward.10} parent=0 // pred_check
    _
  $region39: #{encoder_decoder_forward.10} parent=0 // pred_check_branch
    %357 = sbr.rel (0) target = $region41
  $region40: #{encoder_decoder_forward.10} parent=0 // pred_region
    _
  $region41: #{encoder_decoder_forward.10} parent=0 // pred_fallthru
    _
  // Predicated region
  $region42: #{encoder_decoder_forward.10} parent=0 // pred_check
    _
  $region43: #{encoder_decoder_forward.10} parent=0 // pred_check_branch
    %359 = sbr.rel (0) target = $region45
  $region44: #{encoder_decoder_forward.10} parent=0 // pred_region
    _
  $region45: #{encoder_decoder_forward.10} parent=0 // pred_fallthru
    _

// kernel: encoder_decoder_forward.12
$region0: #{encoder_decoder_forward.12}
  #allocation0 [shape = 'u32[]', space=smem, size = 0x4, offset = 0x4, fixed_abs, tag = 'smem constant byte address 0x4 - core index']
  #allocation1 [shape = 'u32[72,128]{1,0:T(1,128)}', space=vmem, size = 0x9000, scoped, tag = 'internal scratch']
  #allocation2 [shape = 'f32[8,32]{1,0:T(8,128)}', space=vmem, size = 0x1000, scoped, tag = 'scratch operand']
  %s0 = inlined_call_operand.vmem [shape: f32[7,8,96], index: 0, kind: input, shape index: {}]
  %s1 = inlined_call_operand.vmem [shape: f32[1,8,32], index: 1, kind: input, shape index: {}]
  %s2 = inlined_call_operand.vmem [shape: f32[1,32,96], index: 2, kind: input, shape index: {}]
  %s3 = inlined_call_operand.vmem [shape: f32[1,1,96], index: 3, kind: input, shape index: {}]
  %s4 = inlined_call_operand.vmem [shape: f32[7,8,32], index: 4, kind: output, shape index: {}]
  %s5 = sld [smem:[#allocation0]]
  $region53: #{encoder_decoder_forward.12} parent=0
    _
  %s7 = ssub.s32 1, %s5
  %s8 = scalar_select 0, %s7, %s5
  loop: start=0, step=1, limit=9
  $region2: #{encoder_decoder_forward.12} parent=0 // loop_pre_header
    _
  $region3: #{encoder_decoder_forward.12} parent=0 // loop_header
    %s10 = sphi 0, %s14
    %p11 = scmp.ge.s32.totalorder %s10, 9
    %s17 = sphi 0, %s29
    %s18 = sphi 0, %s25
    %s19 = sphi 0, %s17
    %s20 = sphi 0, %s18
    %s21 = sphi 0, %s19
    %s22 = sphi 0, %s20
    %s44 = sphi 0, %s46
    %s47 = sphi 0, %s44
    %s48 = sphi 0, %s47
    %s64 = sphi 0, %s48
    %s70 = sphi 0, %s72
    %s73 = sphi 0, %s70
    %s74 = sphi 0, %s73
    %s90 = sphi 0, %s74
    %s96 = sphi 0, %s98
    %s99 = sphi 0, %s96
    %s100 = sphi 0, %s99
    %s116 = sphi 0, %s100
    %s122 = sphi 0, %s124
    %s125 = sphi 0, %s122
    %s126 = sphi 0, %s125
    %s142 = sphi 0, %s126
    %s160 = sphi 0, %s162
    %s163 = sphi 0, %s160
    %s164 = sphi 0, %s163
    %s180 = sphi 0, %s164
  $region4: #{encoder_decoder_forward.12} parent=0 // loop_header_branch
    %13 = sbr.rel (%p11) target = $region8
  $region5: #{encoder_decoder_forward.12} parent=0 // loop_body
    %s15 = ssub.s32 %s10, 1
    %s16 = ssub.s32 %s10, 2
    %s23 = sadd.s32 1, %s18
    %p24 = scmp.ge.s32.totalorder %s23, 7
    %s25 = scalar_select %p24, 0, %s23
    %s26 = sadd.s32 1, %s17
    %s27 = scalar_select %p24, %s26, %s17
    %p28 = scmp.ge.s32.totalorder %s27, 1
    %s29 = scalar_select %p28, 0, %s27
    %s30 = smul.u32 %s17, 7
    %s31 = sadd.s32 %s30, %s18
    %s32 = smul.u32 %s18, 2
    %s33 = ssub.s32 6, %s32
    %s34 = smul.u32 %s17, %s33
    %s35 = sadd.s32 %s31, %s34
    %s36 = smul.u32 %s29, 7
    %s37 = sadd.s32 %s36, %s25
    %s38 = smul.u32 %s25, 2
    %s39 = ssub.s32 6, %s38
    %s40 = smul.u32 %s29, %s39
    %s41 = sadd.s32 %s37, %s40
    %s42 = ssub.s32 %s35, %s41
    %p43 = scmp.eq.s32.totalorder %s42, 0
    %s45 = sadd.s32 %s44, 1
    %s46 = scalar_select %p43, %s44, %s45
    %p49 = pneg %p43
    %p50 = scmp.eq.s32.totalorder %s10, 6
    %p51 = por %p49, %p50
    %p52 = scmp.ne.s32.totalorder %s44, %s47
    %p53 = scmp.eq.s32.totalorder %s10, 0
    %p54 = por %p52, %p53
    %p55 = scmp.ne.s32.totalorder %s44, %s47
    %p56 = scmp.eq.s32.totalorder %s15, 6
    %p57 = por %p55, %p56
    %p58 = scmp.ne.s32.totalorder %s47, %s48
    %p59 = scmp.eq.s32.totalorder %s15, 0
    %p60 = por %p58, %p59
    %p61 = scmp.ne.s32.totalorder %s47, %s48
    %p62 = scmp.eq.s32.totalorder %s16, 6
    %p63 = por %p61, %p62
    %p65 = scmp.ne.s32.totalorder %s48, %s64
    %p66 = scmp.eq.s32.totalorder %s16, 0
    %p67 = por %p65, %p66
    %s68 = ssub.s32 %s17, %s29
    %p69 = scmp.eq.s32.totalorder %s68, 0
    %s71 = sadd.s32 %s70, 1
    %s72 = scalar_select %p69, %s70, %s71
    %p75 = pneg %p69
    %p76 = scmp.eq.s32.totalorder %s10, 6
    %p77 = por %p75, %p76
    %p78 = scmp.ne.s32.totalorder %s70, %s73
    %p79 = scmp.eq.s32.totalorder %s10, 0
    %p80 = por %p78, %p79
    %p81 = scmp.ne.s32.totalorder %s70, %s73
    %p82 = scmp.eq.s32.totalorder %s15, 6
    %p83 = por %p81, %p82
    %p84 = scmp.ne.s32.totalorder %s73, %s74
    %p85 = scmp.eq.s32.totalorder %s15, 0
    %p86 = por %p84, %p85
    %p87 = scmp.ne.s32.totalorder %s73, %s74
    %p88 = scmp.eq.s32.totalorder %s16, 6
    %p89 = por %p87, %p88
    %p91 = scmp.ne.s32.totalorder %s74, %s90
    %p92 = scmp.eq.s32.totalorder %s16, 0
    %p93 = por %p91, %p92
    %s94 = ssub.s32 %s17, %s29
    %p95 = scmp.eq.s32.totalorder %s94, 0
    %s97 = sadd.s32 %s96, 1
    %s98 = scalar_select %p95, %s96, %s97
    %p101 = pneg %p95
    %p102 = scmp.eq.s32.totalorder %s10, 6
    %p103 = por %p101, %p102
    %p104 = scmp.ne.s32.totalorder %s96, %s99
    %p105 = scmp.eq.s32.totalorder %s10, 0
    %p106 = por %p104, %p105
    %p107 = scmp.ne.s32.totalorder %s96, %s99
    %p108 = scmp.eq.s32.totalorder %s15, 6
    %p109 = por %p107, %p108
    %p110 = scmp.ne.s32.totalorder %s99, %s100
    %p111 = scmp.eq.s32.totalorder %s15, 0
    %p112 = por %p110, %p111
    %p113 = scmp.ne.s32.totalorder %s99, %s100
    %p114 = scmp.eq.s32.totalorder %s16, 6
    %p115 = por %p113, %p114
    %p117 = scmp.ne.s32.totalorder %s100, %s116
    %p118 = scmp.eq.s32.totalorder %s16, 0
    %p119 = por %p117, %p118
    %s120 = ssub.s32 %s17, %s29
    %p121 = scmp.eq.s32.totalorder %s120, 0
    %s123 = sadd.s32 %s122, 1
    %s124 = scalar_select %p121, %s122, %s123
    %p127 = pneg %p121
    %p128 = scmp.eq.s32.totalorder %s10, 6
    %p129 = por %p127, %p128
    %p130 = scmp.ne.s32.totalorder %s122, %s125
    %p131 = scmp.eq.s32.totalorder %s10, 0
    %p132 = por %p130, %p131
    %p133 = scmp.ne.s32.totalorder %s122, %s125
    %p134 = scmp.eq.s32.totalorder %s15, 6
    %p135 = por %p133, %p134
    %p136 = scmp.ne.s32.totalorder %s125, %s126
    %p137 = scmp.eq.s32.totalorder %s15, 0
    %p138 = por %p136, %p137
    %p139 = scmp.ne.s32.totalorder %s125, %s126
    %p140 = scmp.eq.s32.totalorder %s16, 6
    %p141 = por %p139, %p140
    %p143 = scmp.ne.s32.totalorder %s126, %s142
    %p144 = scmp.eq.s32.totalorder %s16, 0
    %p145 = por %p143, %p144
    %s146 = smul.u32 %s17, 7
    %s147 = sadd.s32 %s146, %s18
    %s148 = smul.u32 %s18, 2
    %s149 = ssub.s32 6, %s148
    %s150 = smul.u32 %s17, %s149
    %s151 = sadd.s32 %s147, %s150
    %s152 = smul.u32 %s29, 7
    %s153 = sadd.s32 %s152, %s25
    %s154 = smul.u32 %s25, 2
    %s155 = ssub.s32 6, %s154
    %s156 = smul.u32 %s29, %s155
    %s157 = sadd.s32 %s153, %s156
    %s158 = ssub.s32 %s151, %s157
    %p159 = scmp.eq.s32.totalorder %s158, 0
    %s161 = sadd.s32 %s160, 1
    %s162 = scalar_select %p159, %s160, %s161
    %p165 = pneg %p159
    %p166 = scmp.eq.s32.totalorder %s10, 6
    %p167 = por %p165, %p166
    %p168 = scmp.ne.s32.totalorder %s160, %s163
    %p169 = scmp.eq.s32.totalorder %s10, 0
    %p170 = por %p168, %p169
    %p171 = scmp.ne.s32.totalorder %s160, %s163
    %p172 = scmp.eq.s32.totalorder %s15, 6
    %p173 = por %p171, %p172
    %p174 = scmp.ne.s32.totalorder %s163, %s164
    %p175 = scmp.eq.s32.totalorder %s15, 0
    %p176 = por %p174, %p175
    %p177 = scmp.ne.s32.totalorder %s163, %s164
    %p178 = scmp.eq.s32.totalorder %s16, 6
    %p179 = por %p177, %p178
    %p181 = scmp.ne.s32.totalorder %s164, %s180
    %p182 = scmp.eq.s32.totalorder %s16, 0
    %p183 = por %p181, %p182
    %p184 = scmp.le.s32.totalorder 1, %s10
    %p185 = scmp.lt.s32.totalorder %s10, 8
    %p186 = pnand %p184, %p185
    %p187 = pneg %p186
    // Predicated region
    $region9: #{encoder_decoder_forward.12} parent=5 // pred_check
      _
    $region10: #{encoder_decoder_forward.12} parent=5 // pred_check_branch
      %189 = sbr.rel (%p186) target = $region12
    $region11: #{encoder_decoder_forward.12} parent=5 // pred_region
      %s190 = ssub.s32 %s10, 1
      // Predicated region
      $region13: #{encoder_decoder_forward.12} parent=11 // pred_check
        %p191 = pneg %p86
      $region14: #{encoder_decoder_forward.12} parent=11 // pred_check_branch
        %193 = sbr.rel (%p191) target = $region16
      $region15: #{encoder_decoder_forward.12} parent=11 // pred_region
        %p194 = scmp.lt.s32.totalorder %s19, 0
        %s195 = scalar_select %p194, %s19, 0
        %s196 = smul.addr %s195, 8
        %s197 = scalar_lea.vmem %s1, %s196
      $region16: #{encoder_decoder_forward.12} parent=11 // pred_fallthru
        _
      // Predicated region
      $region17: #{encoder_decoder_forward.12} parent=11 // pred_check
        %p198 = pneg %p112
      $region18: #{encoder_decoder_forward.12} parent=11 // pred_check_branch
        %200 = sbr.rel (%p198) target = $region20
      $region19: #{encoder_decoder_forward.12} parent=11 // pred_region
        %p201 = scmp.lt.s32.totalorder %s19, 0
        %s202 = scalar_select %p201, %s19, 0
        %s203 = smul.addr %s202, 4
        %s204 = smul.addr %s203, 8
        %s205 = scalar_lea.vmem %s2, %s204
      $region20: #{encoder_decoder_forward.12} parent=11 // pred_fallthru
        _
      // Predicated region
      $region21: #{encoder_decoder_forward.12} parent=11 // pred_check
        %p206 = pneg %p138
      $region22: #{encoder_decoder_forward.12} parent=11 // pred_check_branch
        %208 = sbr.rel (%p206) target = $region24
      $region23: #{encoder_decoder_forward.12} parent=11 // pred_region
        %p209 = scmp.lt.s32.totalorder %s19, 0
        %s210 = scalar_select %p209, %s19, 0
        %s211 = scalar_lea.vmem %s3, %s210
      $region24: #{encoder_decoder_forward.12} parent=11 // pred_fallthru
        _
    $region12: #{encoder_decoder_forward.12} parent=5 // pred_fallthru
      _
    %p212 = scmp.lt.s32.totalorder %s10, 7
    // Predicated region
    $region25: #{encoder_decoder_forward.12} parent=5 // pred_check
      %p213 = pneg %p212
    $region26: #{encoder_decoder_forward.12} parent=5 // pred_check_branch
      %215 = sbr.rel (%p213) target = $region28
    $region27: #{encoder_decoder_forward.12} parent=5 // pred_region
      // Predicated region
      $region29: #{encoder_decoder_forward.12} parent=27 // pred_check
        %p216 = pneg %p54
      $region30: #{encoder_decoder_forward.12} parent=27 // pred_check_branch
        %218 = sbr.rel (%p216) target = $region32
      $region31: #{encoder_decoder_forward.12} parent=27 // pred_region
        %s219 = smul.u32 %s17, 7
        %s220 = sadd.s32 %s219, %s18
        %s221 = smul.u32 %s18, 2
        %s222 = ssub.s32 6, %s221
        %s223 = smul.u32 %s17, %s222
        %s224 = sadd.s32 %s220, %s223
        %p225 = scmp.lt.s32.totalorder %s224, 6
        %s226 = scalar_select %p225, %s224, 6
        %s227 = smul.addr %s226, 8
        %s228 = scalar_lea.vmem %s0, %s227
        %s229 = smul.u32 %s17, 7
        %s230 = sadd.s32 %s229, %s18
        %s231 = smul.u32 %s18, 2
        %s232 = ssub.s32 6, %s231
        %s233 = smul.u32 %s17, %s232
        %s234 = sadd.s32 %s230, %s233
      $region32: #{encoder_decoder_forward.12} parent=27 // pred_fallthru
        _
    $region28: #{encoder_decoder_forward.12} parent=5 // pred_fallthru
      _
    %p235 = scmp.le.s32.totalorder 1, %s10
    %p236 = scmp.lt.s32.totalorder %s10, 8
    %p237 = pnand %p235, %p236
    %p238 = pneg %p237
    // Predicated region
    $region33: #{encoder_decoder_forward.12} parent=5 // pred_check
      _
    $region34: #{encoder_decoder_forward.12} parent=5 // pred_check_branch
      %240 = sbr.rel (%p237) target = $region36
    $region35: #{encoder_decoder_forward.12} parent=5 // pred_region
      %s241 = ssub.s32 %s10, 1
      %s242 = smul.u32 %s19, 7
      %s243 = sadd.s32 %s242, %s20
      %s244 = smul.u32 %s20, 2
      %s245 = ssub.s32 6, %s244
      %s246 = smul.u32 %s19, %s245
      %s247 = sadd.s32 %s243, %s246
      %p248 = scmp.lt.s32.totalorder %s247, 6
      %s249 = scalar_select %p248, %s247, 6
      %s250 = smul.addr %s249, 8
      %s251 = scalar_lea.vmem %s0, %s250
      %p252 = pneg %p60
      %p253 = pneg %p57
      %p254 = scmp.lt.s32.totalorder %s19, 0
      %s255 = scalar_select %p254, %s19, 0
      %s256 = smul.addr %s255, 8
      %s257 = scalar_lea.vmem %s1, %s256
      %p258 = pneg %p86
      %p259 = pneg %p83
      %p260 = scmp.lt.s32.totalorder %s19, 0
      %s261 = scalar_select %p260, %s19, 0
      %s262 = smul.addr %s261, 4
      %s263 = smul.addr %s262, 8
      %s264 = scalar_lea.vmem %s2, %s263
      %p265 = pneg %p112
      %p266 = pneg %p109
      %p267 = scmp.lt.s32.totalorder %s19, 0
      %s268 = scalar_select %p267, %s19, 0
      %s269 = scalar_lea.vmem %s3, %s268
      %p270 = pneg %p138
      %p271 = pneg %p135
      %p272 = pneg %p176
      %p273 = pneg %p173
      %s274 = smul.u32 %s19, 7
      %s275 = sadd.s32 %s274, %s20
      %s276 = smul.u32 %s20, 2
      %s277 = ssub.s32 6, %s276
      %s278 = smul.u32 %s19, %s277
      %s279 = sadd.s32 %s275, %s278
      %p280 = scmp.lt.s32.totalorder %s279, 6
      %s281 = scalar_select %p280, %s279, 6
      %s282 = smul.addr %s281, 8
      %s283 = scalar_lea.vmem %s4, %s282
      %s284 = smul.u32 %s19, 7
      %s285 = sadd.s32 %s284, %s20
      %s286 = smul.u32 %s20, 2
      %s287 = ssub.s32 6, %s286
      %s288 = smul.u32 %s19, %s287
      %s289 = sadd.s32 %s285, %s288
      %p290 = scmp.lt.s32.totalorder %s289, 6
      %s291 = scalar_select %p290, %s289, 6
      %s292 = smul.addr %s291, 8
      %s293 = scalar_lea.vmem %s0, %s292
      %s294 = smul.u32 %s19, 7
      %s295 = sadd.s32 %s294, %s20
      %s296 = smul.u32 %s20, 2
      %s297 = ssub.s32 6, %s296
      %s298 = smul.u32 %s19, %s297
      %s299 = sadd.s32 %s295, %s298
      %p300 = scmp.lt.s32.totalorder %s19, 0
      %s301 = scalar_select %p300, %s19, 0
      %s302 = smul.addr %s301, 8
      %s303 = scalar_lea.vmem %s1, %s302
      %p304 = scmp.lt.s32.totalorder %s19, 0
      %s305 = scalar_select %p304, %s19, 0
      %s306 = smul.addr %s305, 4
      %s307 = smul.addr %s306, 8
      %s308 = scalar_lea.vmem %s2, %s307
      %p309 = scmp.lt.s32.totalorder %s19, 0
      %s310 = scalar_select %p309, %s19, 0
      %s311 = scalar_lea.vmem %s3, %s310
      %s312 = smul.u32 %s19, 7
      %s313 = sadd.s32 %s312, %s20
      %s314 = smul.u32 %s20, 2
      %s315 = ssub.s32 6, %s314
      %s316 = smul.u32 %s19, %s315
      %s317 = sadd.s32 %s313, %s316
      %p318 = scmp.lt.s32.totalorder %s317, 6
      %s319 = scalar_select %p318, %s317, 6
      %s320 = smul.addr %s319, 8
      %s321 = scalar_lea.vmem %s4, %s320
      %s322 = smul.u32 %s19, 7
      %s323 = sadd.s32 %s322, %s20
      %s324 = smul.u32 %s20, 2
      %s325 = ssub.s32 6, %s324
      %s326 = smul.u32 %s19, %s325
      %s327 = sadd.s32 %s323, %s326
      %p328 = scmp.eq.s32.totalorder %s20, 0
      // Predicated region
      $region37: #{encoder_decoder_forward.12} parent=35 // pred_check
        %p329 = pneg %p328
      $region38: #{encoder_decoder_forward.12} parent=35 // pred_check_branch
        %331 = sbr.rel (%p329) target = $region40
      $region39: #{encoder_decoder_forward.12} parent=35 // pred_region
        %v332 = vld [vmem:[%s303] sm:$0xff]
        %vm333 = vcmask 261120
        %334 = vst.msk [vmem:[#allocation2] sm:$0xff] %vm333, %v332
      $region40: #{encoder_decoder_forward.12} parent=35 // pred_fallthru
        _
      %v335 = vld [vmem:[#allocation2] sm:$0xff]
      %v336 = vld [vmem:[%s293] sm:$0xff]
      %v337 = vld [vmem:[%s308] sm:$0xff]
      %v338 = vld [vmem:[%s308 + $0x8] sm:$0xff]
      %v339 = vld [vmem:[%s308 + $0x10] sm:$0xff]
      %v340 = vld [vmem:[%s308 + $0x18] sm:$0xff]
      %v341 = vld [vmem:[%s311] sm:$0x1]
      %v343 = vperm.slane %v341, 0
      %vm345 = vcmask 261120
      %v347 = vsel %vm345, %v335, 0
      %349 = vmatpush.msra.mxu0 0.0
      %350 = vmatpush.msra.mxu0 0.0
      %351 = vmatpush.msra.mxu0 0.0
      %352 = vmatpush.msra.mxu0 0.0
      %353 = vmatpush.msra.mxu0 0.0
      %354 = vmatpush.msra.mxu0 0.0
      %355 = vmatpush.msra.mxu0 0.0
      %356 = vmatpush.msra.mxu0 0.0
      %357 = vmatpush.msra.mxu0 0.0
      %358 = vmatpush.msra.mxu0 0.0
      %359 = vmatpush.msra.mxu0 0.0
      %360 = vmatpush.msra.mxu0 0.0
      %361 = vmatpush.msra.mxu0 %v340
      %362 = vmatpush.msra.mxu0 %v339
      %363 = vmatpush.msra.mxu0 %v338
      %364 = vmatpush.msra.mxu0 %v337
      %365 = vmatmul.f32.gmra.mxu0 %v347
      %v366 = vpop.f32.mrf.mxu0
      %v367 = vadd.f32 %v343, %v366
      %368 = vdwg.mxu0
      %v369 = vadd.f32 %v336, %v367
      %v370 = vxor.u32 %v369, 2147483648
      %v371 = vmul.f32 %v370, 1.442695
      %v372 = vpow.pop %v371
      %v373 = vadd.f32 %v372, 1.0
      %v374 = vrcp.pop %v373
      %v375 = vmul.f32 %v373, %v374
      %v376 = vsub.f32 1.0, %v375
      %v377 = vmul.f32 %v374, %v376
      %v378 = vadd.f32 %v374, %v377
      %vm379 = vweird.f32 %v373
      %vm380 = vweird.f32 %v374
      %vm381 = vmor %vm379, %vm380
      %v382 = vsel %vm381, %v374, %v378
      %v383 = vand.u32 2147483647, %v373
      %vm384 = vcmp.eq.f32.partialorder %v383, 8.507059e+37
      %v385 = vand.u32 %v373, 2147483648
      %v386 = vor.u32 1.1754944e-38, %v385
      %v387 = vsel %vm384, %v386, %v382
      %v388 = vmul.f32 1.0, %v387
      %390 = vrot.lane.b32.xlu0 %v367, 64
      %v391 = vpop.permute.xlu0 %390
      %v393 = vmul.f32 %v388, %v391
      %395 = vrot.lane.b32.xlu0 %v393, 64
      %v396 = vpop.permute.xlu0 %395
      %v398 = vadd.f32 %v336, %v396
      %v399 = vtanh.pop %v398
      %v400 = vsub.f32 1.0, %v388
      %402 = vrot.lane.b32.xlu0 %v399, 96
      %v403 = vpop.permute.xlu0 %402
      %v405 = vmul.f32 %v400, %v403
      %406 = vrot.lane.b32.xlu0 %v335, 32
      %v407 = vpop.permute.xlu0 %406
      %v409 = vmul.f32 %v388, %v407
      %v410 = vadd.f32 %v405, %v409
      %412 = vrot.lane.b32.xlu0 %v410, 96
      %v413 = vpop.permute.xlu0 %412
      %415 = vst.msk [vmem:[#allocation2] sm:$0xff] %vm345, %v413
      %416 = vst.msk [vmem:[%s321] sm:$0xff] %vm345, %v413
      %s417 = smul.u32 %s19, 7
      %s418 = sadd.s32 %s417, %s20
      %s419 = smul.u32 %s20, 2
      %s420 = ssub.s32 6, %s419
      %s421 = smul.u32 %s19, %s420
      %s422 = sadd.s32 %s418, %s421
      %p423 = scmp.lt.s32.totalorder %s422, 6
      %s424 = scalar_select %p423, %s422, 6
      %s425 = smul.addr %s424, 8
      %s426 = scalar_lea.vmem %s4, %s425
      // Predicated region
      $region41: #{encoder_decoder_forward.12} parent=35 // pred_check
        %p427 = pneg %p173
      $region42: #{encoder_decoder_forward.12} parent=35 // pred_check_branch
        %429 = sbr.rel (%p427) target = $region44
      $region43: #{encoder_decoder_forward.12} parent=35 // pred_region
        %s430 = smul.u32 %s19, 7
        %s431 = sadd.s32 %s430, %s20
        %s432 = smul.u32 %s20, 2
        %s433 = ssub.s32 6, %s432
        %s434 = smul.u32 %s19, %s433
        %s435 = sadd.s32 %s431, %s434
      $region44: #{encoder_decoder_forward.12} parent=35 // pred_fallthru
        _
    $region36: #{encoder_decoder_forward.12} parent=5 // pred_fallthru
      _
    %p436 = scmp.le.s32.totalorder 2, %s10
    // Predicated region
    $region45: #{encoder_decoder_forward.12} parent=5 // pred_check
      %p437 = pneg %p436
    $region46: #{encoder_decoder_forward.12} parent=5 // pred_check_branch
      %439 = sbr.rel (%p437) target = $region48
    $region47: #{encoder_decoder_forward.12} parent=5 // pred_region
      %s440 = ssub.s32 %s10, 2
      // Predicated region
      $region49: #{encoder_decoder_forward.12} parent=47 // pred_check
        %p441 = pneg %p179
      $region50: #{encoder_decoder_forward.12} parent=47 // pred_check_branch
        %443 = sbr.rel (%p441) target = $region52
      $region51: #{encoder_decoder_forward.12} parent=47 // pred_region
        %s444 = smul.u32 %s21, 7
        %s445 = sadd.s32 %s444, %s22
        %s446 = smul.u32 %s22, 2
        %s447 = ssub.s32 6, %s446
        %s448 = smul.u32 %s21, %s447
        %s449 = sadd.s32 %s445, %s448
        %p450 = scmp.lt.s32.totalorder %s449, 6
        %s451 = scalar_select %p450, %s449, 6
        %s452 = smul.addr %s451, 8
        %s453 = scalar_lea.vmem %s4, %s452
      $region52: #{encoder_decoder_forward.12} parent=47 // pred_fallthru
        _
    $region48: #{encoder_decoder_forward.12} parent=5 // pred_fallthru
      _
  $region6: #{encoder_decoder_forward.12} parent=0 // loop_footer
    %s14 = sadd.s32 1, %s10
  $region7: #{encoder_decoder_forward.12} parent=0 // loop_footer_branch
    %9 = sbr.rel target = $region3
  $region8: #{encoder_decoder_forward.12} parent=0 // loop_exit
    _

// kernel: encoder_decoder_forward.11
$region0: #{encoder_decoder_forward.11}
  #allocation0 [shape = 'u32[]', space=smem, size = 0x4, offset = 0x4, fixed_abs, tag = 'smem constant byte address 0x4 - core index']
  #allocation1 [shape = 'u32[72,128]{1,0:T(1,128)}', space=vmem, size = 0x9000, scoped, tag = 'internal scratch']
  %s0 = inlined_call_operand.vmem [shape: f32[56,32], index: 0, kind: input, shape index: {}]
  %s1 = inlined_call_operand.vmem [shape: f32[32,128], index: 1, kind: input, shape index: {}]
  %s2 = inlined_call_operand.vmem [shape: f32[56,32], index: 2, kind: input, shape index: {}]
  %s3 = inlined_call_operand.vmem [shape: f32[32,128], index: 3, kind: input, shape index: {}]
  %s4 = inlined_call_operand.vmem [shape: f32[1,128], index: 4, kind: input, shape index: {}]
  %s5 = inlined_call_operand.vmem [shape: f32[56,128], index: 5, kind: output, shape index: {}]
  %s6 = sld [smem:[#allocation0]]
  $region30: #{encoder_decoder_forward.11} parent=0
    _
  %s8 = ssub.s32 1, %s6
  %s9 = scalar_select 0, %s8, %s6
  // Predicated region
  $region2: #{encoder_decoder_forward.11} parent=0 // pred_check
    _
  $region3: #{encoder_decoder_forward.11} parent=0 // pred_check_branch
    %11 = sbr.rel (0) target = $region5
  $region4: #{encoder_decoder_forward.11} parent=0 // pred_region
    _
  $region5: #{encoder_decoder_forward.11} parent=0 // pred_fallthru
    _
  // Predicated region
  $region6: #{encoder_decoder_forward.11} parent=0 // pred_check
    _
  $region7: #{encoder_decoder_forward.11} parent=0 // pred_check_branch
    %13 = sbr.rel (0) target = $region9
  $region8: #{encoder_decoder_forward.11} parent=0 // pred_region
    _
  $region9: #{encoder_decoder_forward.11} parent=0 // pred_fallthru
    _
  // Predicated region
  $region10: #{encoder_decoder_forward.11} parent=0 // pred_check
    _
  $region11: #{encoder_decoder_forward.11} parent=0 // pred_check_branch
    %15 = sbr.rel (0) target = $region13
  $region12: #{encoder_decoder_forward.11} parent=0 // pred_region
    _
  $region13: #{encoder_decoder_forward.11} parent=0 // pred_fallthru
    _
  // Predicated region
  $region14: #{encoder_decoder_forward.11} parent=0 // pred_check
    _
  $region15: #{encoder_decoder_forward.11} parent=0 // pred_check_branch
    %17 = sbr.rel (0) target = $region17
  $region16: #{encoder_decoder_forward.11} parent=0 // pred_region
    _
  $region17: #{encoder_decoder_forward.11} parent=0 // pred_fallthru
    _
  // Predicated region
  $region18: #{encoder_decoder_forward.11} parent=0 // pred_check
    _
  $region19: #{encoder_decoder_forward.11} parent=0 // pred_check_branch
    %19 = sbr.rel (0) target = $region21
  $region20: #{encoder_decoder_forward.11} parent=0 // pred_region
    _
  $region21: #{encoder_decoder_forward.11} parent=0 // pred_fallthru
    _
  %v20 = vld [vmem:[%s0] sm:$0xff]
  %v21 = vld [vmem:[%s0 + $0x8] sm:$0xff]
  %v22 = vld [vmem:[%s0 + $0x10] sm:$0xff]
  %v23 = vld [vmem:[%s0 + $0x18] sm:$0xff]
  %v24 = vld [vmem:[%s0 + $0x20] sm:$0xff]
  %v25 = vld [vmem:[%s0 + $0x28] sm:$0xff]
  %v26 = vld [vmem:[%s0 + $0x30] sm:$0xff]
  %v27 = vld [vmem:[%s1] sm:$0xff]
  %v28 = vld [vmem:[%s1 + $0x8] sm:$0xff]
  %v29 = vld [vmem:[%s1 + $0x10] sm:$0xff]
  %v30 = vld [vmem:[%s1 + $0x18] sm:$0xff]
  %v31 = vld [vmem:[%s2] sm:$0xff]
  %v32 = vld [vmem:[%s2 + $0x8] sm:$0xff]
  %v33 = vld [vmem:[%s2 + $0x10] sm:$0xff]
  %v34 = vld [vmem:[%s2 + $0x18] sm:$0xff]
  %v35 = vld [vmem:[%s2 + $0x20] sm:$0xff]
  %v36 = vld [vmem:[%s2 + $0x28] sm:$0xff]
  %v37 = vld [vmem:[%s2 + $0x30] sm:$0xff]
  %v38 = vld [vmem:[%s3] sm:$0xff]
  %v39 = vld [vmem:[%s3 + $0x8] sm:$0xff]
  %v40 = vld [vmem:[%s3 + $0x10] sm:$0xff]
  %v41 = vld [vmem:[%s3 + $0x18] sm:$0xff]
  %vm42 = vcmask 261120
  %v44 = vsel %vm42, %v31, 0
  %v47 = vsel %vm42, %v32, 0
  %v50 = vsel %vm42, %v33, 0
  %v53 = vsel %vm42, %v34, 0
  %v56 = vsel %vm42, %v35, 0
  %v59 = vsel %vm42, %v36, 0
  %v62 = vsel %vm42, %v37, 0
  %64 = vmatpush.msra.mxu0 0.0
  %65 = vmatpush.msra.mxu0 0.0
  %66 = vmatpush.msra.mxu0 0.0
  %67 = vmatpush.msra.mxu0 0.0
  %68 = vmatpush.msra.mxu0 0.0
  %69 = vmatpush.msra.mxu0 0.0
  %70 = vmatpush.msra.mxu0 0.0
  %71 = vmatpush.msra.mxu0 0.0
  %72 = vmatpush.msra.mxu0 0.0
  %73 = vmatpush.msra.mxu0 0.0
  %74 = vmatpush.msra.mxu0 0.0
  %75 = vmatpush.msra.mxu0 0.0
  %76 = vmatpush.msra.mxu0 %v41
  %77 = vmatpush.msra.mxu0 %v40
  %78 = vmatpush.msra.mxu0 %v39
  %79 = vmatpush.msra.mxu0 %v38
  %80 = vmatmul.f32.gmra.mxu0 %v44
  %v81 = vpop.f32.mrf.mxu0
  %v82 = vadd.f32 0.0, %v81
  %83 = vmatmul.f32.gmra.mxu0 %v47
  %v84 = vpop.f32.mrf.mxu0
  %v85 = vadd.f32 0.0, %v84
  %86 = vmatmul.f32.gmra.mxu0 %v50
  %v87 = vpop.f32.mrf.mxu0
  %v88 = vadd.f32 0.0, %v87
  %89 = vmatmul.f32.gmra.mxu0 %v53
  %v90 = vpop.f32.mrf.mxu0
  %v91 = vadd.f32 0.0, %v90
  %92 = vmatmul.f32.gmra.mxu0 %v56
  %v93 = vpop.f32.mrf.mxu0
  %v94 = vadd.f32 0.0, %v93
  %95 = vmatmul.f32.gmra.mxu0 %v59
  %v96 = vpop.f32.mrf.mxu0
  %v97 = vadd.f32 0.0, %v96
  %98 = vmatmul.f32.gmra.mxu0 %v62
  %v99 = vpop.f32.mrf.mxu0
  %v100 = vadd.f32 0.0, %v99
  %101 = vdwg.mxu0
  %v103 = vsel %vm42, %v20, 0
  %v106 = vsel %vm42, %v21, 0
  %v109 = vsel %vm42, %v22, 0
  %v112 = vsel %vm42, %v23, 0
  %v115 = vsel %vm42, %v24, 0
  %v118 = vsel %vm42, %v25, 0
  %v121 = vsel %vm42, %v26, 0
  %123 = vmatpush.msra.mxu0 0.0
  %124 = vmatpush.msra.mxu0 0.0
  %125 = vmatpush.msra.mxu0 0.0
  %126 = vmatpush.msra.mxu0 0.0
  %127 = vmatpush.msra.mxu0 0.0
  %128 = vmatpush.msra.mxu0 0.0
  %129 = vmatpush.msra.mxu0 0.0
  %130 = vmatpush.msra.mxu0 0.0
  %131 = vmatpush.msra.mxu0 0.0
  %132 = vmatpush.msra.mxu0 0.0
  %133 = vmatpush.msra.mxu0 0.0
  %134 = vmatpush.msra.mxu0 0.0
  %135 = vmatpush.msra.mxu0 %v30
  %136 = vmatpush.msra.mxu0 %v29
  %137 = vmatpush.msra.mxu0 %v28
  %138 = vmatpush.msra.mxu0 %v27
  %139 = vmatmul.f32.gmra.mxu0 %v103
  %v140 = vpop.f32.mrf.mxu0
  %v141 = vadd.f32 %v82, %v140
  %142 = vmatmul.f32.gmra.mxu0 %v106
  %v143 = vpop.f32.mrf.mxu0
  %v144 = vadd.f32 %v85, %v143
  %145 = vmatmul.f32.gmra.mxu0 %v109
  %v146 = vpop.f32.mrf.mxu0
  %v147 = vadd.f32 %v88, %v146
  %148 = vmatmul.f32.gmra.mxu0 %v112
  %v149 = vpop.f32.mrf.mxu0
  %v150 = vadd.f32 %v91, %v149
  %151 = vmatmul.f32.gmra.mxu0 %v115
  %v152 = vpop.f32.mrf.mxu0
  %v153 = vadd.f32 %v94, %v152
  %154 = vmatmul.f32.gmra.mxu0 %v118
  %v155 = vpop.f32.mrf.mxu0
  %v156 = vadd.f32 %v97, %v155
  %157 = vmatmul.f32.gmra.mxu0 %v121
  %v158 = vpop.f32.mrf.mxu0
  %v159 = vadd.f32 %v100, %v158
  %160 = vdwg.mxu0
  %v161 = vld [vmem:[%s4] sm:$0x1]
  %v163 = vperm.slane %v161, 0
  %v165 = vadd.f32 %v141, %v163
  %v166 = vadd.f32 %v144, %v163
  %v167 = vadd.f32 %v147, %v163
  %v168 = vadd.f32 %v150, %v163
  %v169 = vadd.f32 %v153, %v163
  %v170 = vadd.f32 %v156, %v163
  %v171 = vadd.f32 %v159, %v163
  %172 = vst [vmem:[%s5] sm:$0xff] %v165
  %173 = vst [vmem:[%s5 + $0x8] sm:$0xff] %v166
  %174 = vst [vmem:[%s5 + $0x10] sm:$0xff] %v167
  %175 = vst [vmem:[%s5 + $0x18] sm:$0xff] %v168
  %176 = vst [vmem:[%s5 + $0x20] sm:$0xff] %v169
  %177 = vst [vmem:[%s5 + $0x28] sm:$0xff] %v170
  %178 = vst [vmem:[%s5 + $0x30] sm:$0xff] %v171
  // Predicated region
  $region22: #{encoder_decoder_forward.11} parent=0 // pred_check
    _
  $region23: #{encoder_decoder_forward.11} parent=0 // pred_check_branch
    %180 = sbr.rel (0) target = $region25
  $region24: #{encoder_decoder_forward.11} parent=0 // pred_region
    _
  $region25: #{encoder_decoder_forward.11} parent=0 // pred_fallthru
    _
  // Predicated region
  $region26: #{encoder_decoder_forward.11} parent=0 // pred_check
    _
  $region27: #{encoder_decoder_forward.11} parent=0 // pred_check_branch
    %182 = sbr.rel (0) target = $region29
  $region28: #{encoder_decoder_forward.11} parent=0 // pred_region
    _
  $region29: #{encoder_decoder_forward.11} parent=0 // pred_fallthru
    _

</llo_original>
